<compile_context>
chip_gen: v7x
topology: tpu7x:2x2x1
jax: 0.10.0
libtpu: 0.0.40
codegen_flags: <defaults>
</compile_context>

<pallas_src>
import numpy as np
import jax
import jax.numpy as jnp
from jax.experimental import pallas as pl
from jax.experimental.pallas import tpu as pltpu

LEAK = 0.2        # LeakyReLU negative slope
BN_EPS = 0.8      # nn.BatchNorm2d(out_filters, 0.8) -> eps = 0.8
HEAD_LANES = 128  # adv(1) | aux(n_classes) | latent(code_dim), zero padded
CHANS = (8, 16, 32, 64)
B_TILE_MAX = 256  # batch tile = matmul M.  ~10 MiB VMEM at 256 (safe on v7x's
                  # 64 MiB / 32 MiB scoped); v5e/v6e could go 512+.


def _round_up(x, m):
    return (x + m - 1) // m * m


def _layer_dims(channels, img_size):
    chans = (channels,) + CHANS
    dims, size = [], img_size
    for l in range(4):
        c_in, c_out = chans[l], chans[l + 1]
        s_out = size // 2
        lane_in, lane_out = size * c_in, s_out * c_out
        dims.append(dict(c_in=c_in, c_out=c_out, s_in=size, s_out=s_out,
                         lane_in=lane_in, lane_out=lane_out,
                         k_pad=_round_up(lane_in, 128),
                         l_pad=_round_up(lane_out, 128)))
        size = s_out
    return dims


# ----------------------------------------------------------------------------
# Fused kernel: 4x (conv 3x3 s2 p1 + bias + LeakyReLU + eval-BN) + 3 heads
# ----------------------------------------------------------------------------
def _make_kernel(dims):
    def kernel(x_ref,
               w1_ref, e1_ref, w2_ref, e2_ref, w3_ref, e3_ref, w4_ref, e4_ref,
               wh_ref, bh_ref,
               y_ref,
               s2_ref, s3_ref, s4_ref, s5_ref):
        w_refs = (w1_ref, w2_ref, w3_ref, w4_ref)
        e_refs = (e1_ref, e2_ref, e3_ref, e4_ref)
        out_scr = (s2_ref, s3_ref, s4_ref, s5_ref)

        # Zero ONLY the H-padding border row of each conv-input scratch buffer
        # (interior rows are fully overwritten every grid step; the bottom pad
        # row is never read for even sizes so the buffers omit it entirely).
        for scr in (s2_ref, s3_ref, s4_ref):
            scr[0] = jnp.zeros(scr.shape[1:], jnp.float32)

        in_ref = x_ref
        for l, d in enumerate(dims):
            w_ref, e_ref, o_ref = w_refs[l], e_refs[l], out_scr[l]
            s_out = d["s_out"]

            # One stride-2 conv output row for ALL b_tile images per loop
            # iteration: three [b_tile, k_pad] x [k_pad, l_pad] MXU matmuls
            # (one per kh tap, accumulated in f32), then a small f32 VPU
            # epilogue (conv bias + LeakyReLU(0.2) + eval-BatchNorm).
            @pl.loop(0, s_out)
            def _(j):
                acc = jnp.dot(in_ref[2 * j].astype(jnp.bfloat16),
                              w_ref[0], preferred_element_type=jnp.float32)
                acc += jnp.dot(in_ref[2 * j + 1].astype(jnp.bfloat16),
                               w_ref[1], preferred_element_type=jnp.float32)
                acc += jnp.dot(in_ref[2 * j + 2].astype(jnp.bfloat16),
                               w_ref[2], preferred_element_type=jnp.float32)
                acc = acc + e_ref[0:1, :]             # conv bias
                acc = jnp.maximum(acc, LEAK * acc)    # LeakyReLU(0.2)
                # Dropout2d(0.25): identity in inference mode.
                # TODO(synk): train-mode stochastic channel dropout not done.
                acc = acc * e_ref[1:2, :] + e_ref[2:3, :]   # eval BN (or 1/0)
                o_ref[j + 1] = acc

            in_ref = o_ref

        # Fused heads: one lane-dense [b_tile, feat] x [feat, 128] matmul.
        # adv / label / code slicing and the exact softmax run in the wrapper.
        ds = dims[-1]["s_out"]
        feat = jnp.concatenate([s5_ref[h + 1] for h in range(ds)],
                               axis=-1).astype(jnp.bfloat16)
        y = jnp.dot(feat, wh_ref[...], preferred_element_type=jnp.float32)
        y_ref[...] = y + bh_ref[...]

    return kernel


# ----------------------------------------------------------------------------
# pallas_call wrapper
# ----------------------------------------------------------------------------
def make_discriminator(channels, img_size, n_classes, code_dim,
                       b_tile_max=B_TILE_MAX):
    assert img_size % 16 == 0, "img_size must be divisible by 2**4"
    assert 1 + n_classes + code_dim <= HEAD_LANES
    dims = _layer_dims(channels, img_size)
    s_in, lane_in, k1 = dims[0]["s_in"], dims[0]["lane_in"], dims[0]["k_pad"]
    hp1 = s_in + 2
    kernel = _make_kernel(dims)

    def forward(img_nchw, packed):
        n = img_nchw.shape[0]
        # Batch tile = matmul M dimension.  Multiple of 16 keeps bf16 sublane
        # tiles aligned; capped so input double-buffers + activation scratch
        # stay well inside v7x's VMEM.  (On v7x, batches > b_tile give a
        # multi-step "parallel" grid -> both TensorCores.)
        b_tile = min(b_tile_max, _round_up(n, 16))
        n_pad = _round_up(n, b_tile)

        # NCHW -> rows of flattened (w, c); pad lanes to 128, batch to n_pad,
        # one zero H-row top/bottom (conv padding).  H rows go OUTERMOST so
        # every conv tap read in the kernel is a contiguous [b_tile, lanes]
        # slab.  Cast to bf16 (halves the input HBM->VMEM DMA).
        x = jnp.transpose(img_nchw, (0, 2, 3, 1)).reshape(n, s_in, lane_in)
        x = jnp.pad(x, ((0, n_pad - n), (1, 1), (0, k1 - lane_in)))
        x = jnp.transpose(x, (1, 0, 2)).astype(jnp.bfloat16)  # [hp1,n_pad,k1]

        args = [x]
        in_specs = [pl.BlockSpec((hp1, b_tile, k1), lambda i: (0, i, 0))]
        for l in range(4):
            w, ep = packed[f"w{l}"], packed[f"ep{l}"]
            args += [w, ep]
            in_specs += [pl.BlockSpec(w.shape, lambda i: (0, 0, 0)),
                         pl.BlockSpec(ep.shape, lambda i: (0, 0))]
        args += [packed["wh"], packed["bh"]]
        in_specs += [pl.BlockSpec(packed["wh"].shape, lambda i: (0, 0)),
                     pl.BlockSpec(packed["bh"].shape, lambda i: (0, 0))]

        # Inter-layer activation scratch: [s_out + 1 padded H rows, batch,
        # W*C lanes] f32.  Row 0 is the zero top pad; the bottom pad row is
        # never read for even sizes so it is omitted.
        scratch_shapes = [
            pltpu.VMEM((dims[l]["s_out"] + 1, b_tile, dims[l]["l_pad"]),
                       jnp.float32)
            for l in range(4)
        ]

        y = pl.pallas_call(
            kernel,
            grid=(n_pad // b_tile,),
            in_specs=in_specs,
            out_specs=pl.BlockSpec((b_tile, HEAD_LANES), lambda i: (i, 0)),
            out_shape=jax.ShapeDtypeStruct((n_pad, HEAD_LANES), jnp.float32),
            scratch_shapes=scratch_shapes,
            compiler_params=pltpu.CompilerParams(
                dimension_semantics=("parallel",)),
        )(*args)

        y = y[:n]
        validity = y[:, 0:1]
        label = jax.nn.softmax(y[:, 1:1 + n_classes], axis=-1)  # exact, f32
        latent = y[:, 1 + n_classes:1 + n_classes + code_dim]
        return validity, label, latent

    return jax.jit(forward)


# ----------------------------------------------------------------------------
# Host-side one-time weight folding (conv taps + stride + padding, eval-BN)
# ----------------------------------------------------------------------------
def pack_params(params, channels, img_size, n_classes, code_dim):
    dims = _layer_dims(channels, img_size)
    ds = img_size // 16
    packed = {}

    for l, d in enumerate(dims):
        blk = params["conv"][l]
        w = np.asarray(blk["w"], np.float32)      # [c_out, c_in, 3, 3]
        b = np.asarray(blk["b"], np.float32)      # [c_out]
        c_in, c_out = d["c_in"], d["c_out"]
        w_in, w_out = d["s_in"], d["s_out"]
        k_pad, l_pad = d["k_pad"], d["l_pad"]

        # wf[kh, (t, ci), (j, co)] = w[co, ci, kh, kw]  with t = 2j + kw - 1
        # (out-of-range t -> W-direction zero padding; lanes padded to 128).
        wf = np.zeros((3, k_pad, l_pad), np.float32)
        for kh in range(3):
            for kw in range(3):
                for j in range(w_out):
                    t = 2 * j + kw - 1
                    if 0 <= t < w_in:
                        wf[kh, t * c_in:(t + 1) * c_in,
                           j * c_out:(j + 1) * c_out] = w[:, :, kh, kw].T
        packed[f"w{l}"] = jnp.asarray(wf, jnp.bfloat16)      # [3, k_pad, l_pad]

        # Epilogue constants: row0 = conv bias, row1/row2 = eval-BN scale/shift
        # (identity when the block has no BN).
        ep = np.zeros((3, l_pad), np.float32)
        ep[1, :] = 1.0
        ep[0, :d["lane_out"]] = np.tile(b, w_out)
        if blk.get("bn") is not None:
            gamma, beta, mean, var = (np.asarray(t, np.float32).reshape(-1)
                                      for t in blk["bn"])
            scale = gamma / np.sqrt(var + BN_EPS)
            shift = beta - mean * scale
            ep[1, :d["lane_out"]] = np.tile(scale, w_out)
            ep[2, :d["lane_out"]] = np.tile(shift, w_out)
        packed[f"ep{l}"] = jnp.asarray(ep)

    # Heads: one [feat, 128] matmul.  Rows permuted from the PyTorch NCHW
    # flatten order (c*ds*ds + h*ds + w) to the kernel's (h, w, c) order.
    l_pad4, c4 = dims[-1]["l_pad"], dims[-1]["c_out"]
    wh = np.zeros((ds * l_pad4, HEAD_LANES), np.float32)
    bh = np.zeros((1, HEAD_LANES), np.float32)
    wadv = np.asarray(params["wadv"], np.float32)
    waux = np.asarray(params["waux"], np.float32)
    wlat = np.asarray(params["wlat"], np.float32)
    for c in range(c4):
        for h in range(ds):
            for w_ in range(ds):
                src = c * ds * ds + h * ds + w_
                dst = h * l_pad4 + w_ * c4 + c
                wh[dst, 0] = wadv[src, 0]
                wh[dst, 1:1 + n_classes] = waux[src, :]
                wh[dst, 1 + n_classes:1 + n_classes + code_dim] = wlat[src, :]
    bh[0, 0] = np.asarray(params["badv"], np.float32).reshape(-1)[0]
    bh[0, 1:1 + n_classes] = np.asarray(params["baux"], np.float32).reshape(-1)
    bh[0, 1 + n_classes:1 + n_classes + code_dim] = np.asarray(
        params["blat"], np.float32).reshape(-1)
    packed["wh"] = jnp.asarray(wh, jnp.bfloat16)
    packed["bh"] = jnp.asarray(bh)
    return packed


# ----------------------------------------------------------------------------
# Deterministic parameter construction (PyTorch-style layouts)
# ----------------------------------------------------------------------------
def make_params(key, channels, img_size, n_classes, code_dim):
    chans = (channels,) + CHANS
    conv_params = []
    for i in range(4):
        cin, cout = chans[i], chans[i + 1]
        key, kw_, kb_, kg_, kbt_, km_, kv_ = jax.random.split(key, 7)
        blk = {
            "w": 0.1 * jax.random.normal(kw_, (cout, cin, 3, 3), jnp.float32),
            "b": 0.1 * jax.random.normal(kb_, (cout,), jnp.float32),
        }
        if i > 0:  # first block has bn=False
            blk["bn"] = (
                1.0 + 0.1 * jax.random.normal(kg_, (cout,), jnp.float32),
                0.1 * jax.random.normal(kbt_, (cout,), jnp.float32),
                0.1 * jax.random.normal(km_, (cout,), jnp.float32),
                1.0 + 0.1 * jax.random.uniform(kv_, (cout,), jnp.float32),
            )
        conv_params.append(blk)

    ds = img_size // 16
    feat_dim = 64 * ds * ds
    key, k1, k2, k3, k4, k5, k6 = jax.random.split(key, 7)
    return {
        "conv": conv_params,
        "wadv": 0.1 * jax.random.normal(k1, (feat_dim, 1), jnp.float32),
        "badv": 0.1 * jax.random.normal(k2, (1,), jnp.float32),
        "waux": 0.1 * jax.random.normal(k3, (feat_dim, n_classes), jnp.float32),
        "baux": 0.1 * jax.random.normal(k4, (n_classes,), jnp.float32),
        "wlat": 0.1 * jax.random.normal(k5, (feat_dim, code_dim), jnp.float32),
        "blat": 0.1 * jax.random.normal(k6, (code_dim,), jnp.float32),
    }


# Pure-JAX reference (mirrors the PyTorch module, f32) for a sanity check.
def reference_forward(img, params):
    x = img.astype(jnp.float32)
    for blk in params["conv"]:
        x = jax.lax.conv_general_dilated(
            x, blk["w"], window_strides=(2, 2), padding=((1, 1), (1, 1)),
            dimension_numbers=("NCHW", "OIHW", "NCHW"))
        x = x + blk["b"].reshape(1, -1, 1, 1)
        x = jnp.where(x >= 0, x, LEAK * x)
        if blk.get("bn") is not None:
            gamma, beta, mean, var = blk["bn"]
            inv = jax.lax.rsqrt(var + BN_EPS) * gamma
            x = (x - mean.reshape(1, -1, 1, 1)) * inv.reshape(1, -1, 1, 1) \
                + beta.reshape(1, -1, 1, 1)
    feat = x.reshape(x.shape[0], -1)
    validity = feat @ params["wadv"] + params["badv"]
    label = jax.nn.softmax(feat @ params["waux"] + params["baux"], axis=-1)
    latent = feat @ params["wlat"] + params["blat"]
    return validity, label, latent


# ----------------------------------------------------------------------------
if __name__ == "__main__":
    N, CHANNELS, IMG_SIZE = 2, 1, 32
    N_CLASSES, CODE_DIM = 10, 2

    root = jax.random.PRNGKey(0)
    k_img, k_par = jax.random.split(root)
    img = jax.random.normal(k_img, (N, CHANNELS, IMG_SIZE, IMG_SIZE),
                            jnp.float32)
    params = make_params(k_par, CHANNELS, IMG_SIZE, N_CLASSES, CODE_DIM)
    packed = pack_params(params, CHANNELS, IMG_SIZE, N_CLASSES, CODE_DIM)

    forward = make_discriminator(CHANNELS, IMG_SIZE, N_CLASSES, CODE_DIM)
    validity, label, latent_code = forward(img, packed)
    jax.block_until_ready((validity, label, latent_code))

    assert validity.shape == (N, 1)
    assert label.shape == (N, N_CLASSES)
    assert latent_code.shape == (N, CODE_DIM)
    assert jnp.allclose(jnp.sum(label, axis=-1), 1.0, atol=1e-3)

    # Numerical sanity check against the plain-JAX f32 reference
    # (loose tolerance: kernel matmuls run in bf16).
    ref_v, ref_l, ref_c = reference_forward(img, params)
    assert jnp.max(jnp.abs(validity - ref_v)) < 5e-2
    assert jnp.max(jnp.abs(label - ref_l)) < 5e-2
    assert jnp.max(jnp.abs(latent_code - ref_c)) < 5e-2

    print("KERNEL_OK")
</pallas_src>

<mosaic_0001>
module attributes {stable_mosaic.version = 11 : i64} {
  func.func @kernel(%arg0: i32, %arg1: memref<34x16x128xbf16, #tpu.memory_space<vmem>>, %arg2: memref<3x128x128xbf16, #tpu.memory_space<vmem>>, %arg3: memref<3x128xf32, #tpu.memory_space<vmem>>, %arg4: memref<3x128x128xbf16, #tpu.memory_space<vmem>>, %arg5: memref<3x128xf32, #tpu.memory_space<vmem>>, %arg6: memref<3x128x128xbf16, #tpu.memory_space<vmem>>, %arg7: memref<3x128xf32, #tpu.memory_space<vmem>>, %arg8: memref<3x128x128xbf16, #tpu.memory_space<vmem>>, %arg9: memref<3x128xf32, #tpu.memory_space<vmem>>, %arg10: memref<256x128xbf16, #tpu.memory_space<vmem>>, %arg11: memref<1x128xf32, #tpu.memory_space<vmem>>, %arg12: memref<16x128xf32, #tpu.memory_space<vmem>>, %arg13: memref<17x16x128xf32, #tpu.memory_space<vmem>>, %arg14: memref<9x16x128xf32, #tpu.memory_space<vmem>>, %arg15: memref<5x16x128xf32, #tpu.memory_space<vmem>>, %arg16: memref<3x16x128xf32, #tpu.memory_space<vmem>>) attributes {dimension_semantics = [#tpu.dimension_semantics<parallel>], iteration_bounds = array<i64: 1>, scalar_prefetch = 0 : i64, scratch_operands = 4 : i64, tpu.core_type = #tpu.core_type<tc>, window_params = [{transform_indices = @transform_0, window_bounds = array<i64: 34, 16, 128>}, {pipeline_mode = #tpu.pipeline_mode<synchronous>, transform_indices = @transform_1, window_bounds = array<i64: 3, 128, 128>}, {pipeline_mode = #tpu.pipeline_mode<synchronous>, transform_indices = @transform_2, window_bounds = array<i64: 3, 128>}, {pipeline_mode = #tpu.pipeline_mode<synchronous>, transform_indices = @transform_3, window_bounds = array<i64: 3, 128, 128>}, {pipeline_mode = #tpu.pipeline_mode<synchronous>, transform_indices = @transform_4, window_bounds = array<i64: 3, 128>}, {pipeline_mode = #tpu.pipeline_mode<synchronous>, transform_indices = @transform_5, window_bounds = array<i64: 3, 128, 128>}, {pipeline_mode = #tpu.pipeline_mode<synchronous>, transform_indices = @transform_6, window_bounds = array<i64: 3, 128>}, {pipeline_mode = #tpu.pipeline_mode<synchronous>, transform_indices = @transform_7, window_bounds = array<i64: 3, 128, 128>}, {pipeline_mode = #tpu.pipeline_mode<synchronous>, transform_indices = @transform_8, window_bounds = array<i64: 3, 128>}, {pipeline_mode = #tpu.pipeline_mode<synchronous>, transform_indices = @transform_9, window_bounds = array<i64: 256, 128>}, {pipeline_mode = #tpu.pipeline_mode<synchronous>, transform_indices = @transform_10, window_bounds = array<i64: 1, 128>}, {transform_indices = @transform_11, window_bounds = array<i64: 16, 128>}]} {
    %cst = arith.constant 0.000000e+00 : f32
    %0 = vector.broadcast %cst : f32 to vector<16x128xf32>
    %c0 = arith.constant 0 : index
    %c0_0 = arith.constant 0 : index
    %c0_1 = arith.constant 0 : index
    %1 = vector.load %arg13[%c0, %c0_0, %c0_1] : memref<17x16x128xf32, #tpu.memory_space<vmem>>, vector<1x16x128xf32>
    %2 = vector.shape_cast %1 : vector<1x16x128xf32> to vector<16x128xf32>
    %3 = vector.shape_cast %0 : vector<16x128xf32> to vector<1x16x128xf32>
    tpu.vector_store %arg13[%c0, %c0_0, %c0_1], %3 {strides = array<i32>} : memref<17x16x128xf32, #tpu.memory_space<vmem>>, vector<1x16x128xf32>,
    %cst_2 = arith.constant 0.000000e+00 : f32
    %4 = vector.broadcast %cst_2 : f32 to vector<16x128xf32>
    %c0_3 = arith.constant 0 : index
    %c0_4 = arith.constant 0 : index
    %c0_5 = arith.constant 0 : index
    %5 = vector.load %arg14[%c0_3, %c0_4, %c0_5] : memref<9x16x128xf32, #tpu.memory_space<vmem>>, vector<1x16x128xf32>
    %6 = vector.shape_cast %5 : vector<1x16x128xf32> to vector<16x128xf32>
    %7 = vector.shape_cast %4 : vector<16x128xf32> to vector<1x16x128xf32>
    tpu.vector_store %arg14[%c0_3, %c0_4, %c0_5], %7 {strides = array<i32>} : memref<9x16x128xf32, #tpu.memory_space<vmem>>, vector<1x16x128xf32>,
    %cst_6 = arith.constant 0.000000e+00 : f32
    %8 = vector.broadcast %cst_6 : f32 to vector<16x128xf32>
    %c0_7 = arith.constant 0 : index
    %c0_8 = arith.constant 0 : index
    %c0_9 = arith.constant 0 : index
    %9 = vector.load %arg15[%c0_7, %c0_8, %c0_9] : memref<5x16x128xf32, #tpu.memory_space<vmem>>, vector<1x16x128xf32>
    %10 = vector.shape_cast %9 : vector<1x16x128xf32> to vector<16x128xf32>
    %11 = vector.shape_cast %8 : vector<16x128xf32> to vector<1x16x128xf32>
    tpu.vector_store %arg15[%c0_7, %c0_8, %c0_9], %11 {strides = array<i32>} : memref<5x16x128xf32, #tpu.memory_space<vmem>>, vector<1x16x128xf32>,
    %c0_i32 = arith.constant 0 : i32
    %c16_i32 = arith.constant 16 : i32
    %12 = arith.addi %c0_i32, %c16_i32 : i32
    %c1_i32 = arith.constant 1 : i32
    scf.for %arg17 = %c0_i32 to %12 step %c1_i32  : i32 {
      %c1_i32_31 = arith.constant 1 : i32
      %28 = arith.muli %arg17, %c1_i32_31 : i32
      %c0_i32_32 = arith.constant 0 : i32
      %29 = arith.addi %c0_i32_32, %28 : i32
      %c2_i32_33 = arith.constant 2 : i32
      %30 = arith.muli %c2_i32_33, %29 : i32
      %31 = arith.index_cast %30 : i32 to index
      %c0_34 = arith.constant 0 : index
      %c0_35 = arith.constant 0 : index
      %32 = vector.load %arg1[%31, %c0_34, %c0_35] : memref<34x16x128xbf16, #tpu.memory_space<vmem>>, vector<1x16x128xbf16>
      %33 = vector.shape_cast %32 : vector<1x16x128xbf16> to vector<16x128xbf16>
      %c0_36 = arith.constant 0 : index
      %c0_37 = arith.constant 0 : index
      %c0_38 = arith.constant 0 : index
      %34 = vector.load %arg2[%c0_36, %c0_37, %c0_38] : memref<3x128x128xbf16, #tpu.memory_space<vmem>>, vector<1x128x128xbf16>
      %35 = vector.shape_cast %34 : vector<1x128x128xbf16> to vector<128x128xbf16>
      %cst_39 = arith.constant dense<0.000000e+00> : vector<16x128xf32>
      %36 = tpu.matmul %33, %35, %cst_39 {dimension_numbers = #tpu.dot_dimension_numbers<[1], [0], [0], [1], [0, 0, 1, 1], [], []>} : vector<16x128xbf16>, vector<128x128xbf16>, vector<16x128xf32> -> vector<16x128xf32>
      %c2_i32_40 = arith.constant 2 : i32
      %37 = arith.muli %c2_i32_40, %29 : i32
      %c1_i32_41 = arith.constant 1 : i32
      %38 = arith.addi %37, %c1_i32_41 : i32
      %39 = arith.index_cast %38 : i32 to index
      %c0_42 = arith.constant 0 : index
      %c0_43 = arith.constant 0 : index
      %40 = vector.load %arg1[%39, %c0_42, %c0_43] : memref<34x16x128xbf16, #tpu.memory_space<vmem>>, vector<1x16x128xbf16>
      %41 = vector.shape_cast %40 : vector<1x16x128xbf16> to vector<16x128xbf16>
      %c1_44 = arith.constant 1 : index
      %c0_45 = arith.constant 0 : index
      %c0_46 = arith.constant 0 : index
      %42 = vector.load %arg2[%c1_44, %c0_45, %c0_46] : memref<3x128x128xbf16, #tpu.memory_space<vmem>>, vector<1x128x128xbf16>
      %43 = vector.shape_cast %42 : vector<1x128x128xbf16> to vector<128x128xbf16>
      %cst_47 = arith.constant dense<0.000000e+00> : vector<16x128xf32>
      %44 = tpu.matmul %41, %43, %cst_47 {dimension_numbers = #tpu.dot_dimension_numbers<[1], [0], [0], [1], [0, 0, 1, 1], [], []>} : vector<16x128xbf16>, vector<128x128xbf16>, vector<16x128xf32> -> vector<16x128xf32>
      %45 = arith.addf %36, %44 : vector<16x128xf32>
      %c2_i32_48 = arith.constant 2 : i32
      %46 = arith.muli %c2_i32_48, %29 : i32
      %c2_i32_49 = arith.constant 2 : i32
      %47 = arith.addi %46, %c2_i32_49 : i32
      %48 = arith.index_cast %47 : i32 to index
      %c0_50 = arith.constant 0 : index
      %c0_51 = arith.constant 0 : index
      %49 = vector.load %arg1[%48, %c0_50, %c0_51] : memref<34x16x128xbf16, #tpu.memory_space<vmem>>, vector<1x16x128xbf16>
      %50 = vector.shape_cast %49 : vector<1x16x128xbf16> to vector<16x128xbf16>
      %c2_52 = arith.constant 2 : index
      %c0_53 = arith.constant 0 : index
      %c0_54 = arith.constant 0 : index
      %51 = vector.load %arg2[%c2_52, %c0_53, %c0_54] : memref<3x128x128xbf16, #tpu.memory_space<vmem>>, vector<1x128x128xbf16>
      %52 = vector.shape_cast %51 : vector<1x128x128xbf16> to vector<128x128xbf16>
      %cst_55 = arith.constant dense<0.000000e+00> : vector<16x128xf32>
      %53 = tpu.matmul %50, %52, %cst_55 {dimension_numbers = #tpu.dot_dimension_numbers<[1], [0], [0], [1], [0, 0, 1, 1], [], []>} : vector<16x128xbf16>, vector<128x128xbf16>, vector<16x128xf32> -> vector<16x128xf32>
      %54 = arith.addf %45, %53 : vector<16x128xf32>
      %c0_56 = arith.constant 0 : index
      %c0_57 = arith.constant 0 : index
      %55 = vector.load %arg3[%c0_56, %c0_57] : memref<3x128xf32, #tpu.memory_space<vmem>>, vector<1x128xf32>
      %56 = vector.broadcast %55 : vector<1x128xf32> to vector<16x128xf32>
      %57 = arith.addf %54, %56 : vector<16x128xf32>
      %cst_58 = arith.constant 2.000000e-01 : f32
      %58 = vector.broadcast %cst_58 : f32 to vector<16x128xf32>
      %59 = arith.mulf %58, %57 : vector<16x128xf32>
      %60 = arith.maximumf %57, %59 : vector<16x128xf32>
      %c1_59 = arith.constant 1 : index
      %c0_60 = arith.constant 0 : index
      %61 = vector.load %arg3[%c1_59, %c0_60] : memref<3x128xf32, #tpu.memory_space<vmem>>, vector<1x128xf32>
      %62 = vector.broadcast %61 : vector<1x128xf32> to vector<16x128xf32>
      %63 = arith.mulf %60, %62 : vector<16x128xf32>
      %c2_61 = arith.constant 2 : index
      %c0_62 = arith.constant 0 : index
      %64 = vector.load %arg3[%c2_61, %c0_62] : memref<3x128xf32, #tpu.memory_space<vmem>>, vector<1x128xf32>
      %65 = vector.broadcast %64 : vector<1x128xf32> to vector<16x128xf32>
      %66 = arith.addf %63, %65 : vector<16x128xf32>
      %c1_i32_63 = arith.constant 1 : i32
      %67 = arith.addi %29, %c1_i32_63 : i32
      %68 = arith.index_cast %67 : i32 to index
      %c0_64 = arith.constant 0 : index
      %c0_65 = arith.constant 0 : index
      %69 = vector.load %arg13[%68, %c0_64, %c0_65] : memref<17x16x128xf32, #tpu.memory_space<vmem>>, vector<1x16x128xf32>
      %70 = vector.shape_cast %69 : vector<1x16x128xf32> to vector<16x128xf32>
      %71 = vector.shape_cast %66 : vector<16x128xf32> to vector<1x16x128xf32>
      tpu.vector_store %arg13[%68, %c0_64, %c0_65], %71 {strides = array<i32>} : memref<17x16x128xf32, #tpu.memory_space<vmem>>, vector<1x16x128xf32>,
    }
    %c16_i32_10 = arith.constant 16 : i32
    %c0_i32_11 = arith.constant 0 : i32
    %c8_i32 = arith.constant 8 : i32
    %13 = arith.addi %c0_i32_11, %c8_i32 : i32
    %c1_i32_12 = arith.constant 1 : i32
    scf.for %arg17 = %c0_i32_11 to %13 step %c1_i32_12  : i32 {
      %c1_i32_31 = arith.constant 1 : i32
      %28 = arith.muli %arg17, %c1_i32_31 : i32
      %c0_i32_32 = arith.constant 0 : i32
      %29 = arith.addi %c0_i32_32, %28 : i32
      %c2_i32_33 = arith.constant 2 : i32
      %30 = arith.muli %c2_i32_33, %29 : i32
      %31 = arith.index_cast %30 : i32 to index
      %c0_34 = arith.constant 0 : index
      %c0_35 = arith.constant 0 : index
      %32 = vector.load %arg13[%31, %c0_34, %c0_35] : memref<17x16x128xf32, #tpu.memory_space<vmem>>, vector<1x16x128xf32>
      %33 = vector.shape_cast %32 : vector<1x16x128xf32> to vector<16x128xf32>
      %34 = arith.truncf %33 : vector<16x128xf32> to vector<16x128xbf16>
      %c0_36 = arith.constant 0 : index
      %c0_37 = arith.constant 0 : index
      %c0_38 = arith.constant 0 : index
      %35 = vector.load %arg4[%c0_36, %c0_37, %c0_38] : memref<3x128x128xbf16, #tpu.memory_space<vmem>>, vector<1x128x128xbf16>
      %36 = vector.shape_cast %35 : vector<1x128x128xbf16> to vector<128x128xbf16>
      %cst_39 = arith.constant dense<0.000000e+00> : vector<16x128xf32>
      %37 = tpu.matmul %34, %36, %cst_39 {dimension_numbers = #tpu.dot_dimension_numbers<[1], [0], [0], [1], [0, 0, 1, 1], [], []>} : vector<16x128xbf16>, vector<128x128xbf16>, vector<16x128xf32> -> vector<16x128xf32>
      %c2_i32_40 = arith.constant 2 : i32
      %38 = arith.muli %c2_i32_40, %29 : i32
      %c1_i32_41 = arith.constant 1 : i32
      %39 = arith.addi %38, %c1_i32_41 : i32
      %40 = arith.index_cast %39 : i32 to index
      %c0_42 = arith.constant 0 : index
      %c0_43 = arith.constant 0 : index
      %41 = vector.load %arg13[%40, %c0_42, %c0_43] : memref<17x16x128xf32, #tpu.memory_space<vmem>>, vector<1x16x128xf32>
      %42 = vector.shape_cast %41 : vector<1x16x128xf32> to vector<16x128xf32>
      %43 = arith.truncf %42 : vector<16x128xf32> to vector<16x128xbf16>
      %c1_44 = arith.constant 1 : index
      %c0_45 = arith.constant 0 : index
      %c0_46 = arith.constant 0 : index
      %44 = vector.load %arg4[%c1_44, %c0_45, %c0_46] : memref<3x128x128xbf16, #tpu.memory_space<vmem>>, vector<1x128x128xbf16>
      %45 = vector.shape_cast %44 : vector<1x128x128xbf16> to vector<128x128xbf16>
      %cst_47 = arith.constant dense<0.000000e+00> : vector<16x128xf32>
      %46 = tpu.matmul %43, %45, %cst_47 {dimension_numbers = #tpu.dot_dimension_numbers<[1], [0], [0], [1], [0, 0, 1, 1], [], []>} : vector<16x128xbf16>, vector<128x128xbf16>, vector<16x128xf32> -> vector<16x128xf32>
      %47 = arith.addf %37, %46 : vector<16x128xf32>
      %c2_i32_48 = arith.constant 2 : i32
      %48 = arith.muli %c2_i32_48, %29 : i32
      %c2_i32_49 = arith.constant 2 : i32
      %49 = arith.addi %48, %c2_i32_49 : i32
      %50 = arith.index_cast %49 : i32 to index
      %c0_50 = arith.constant 0 : index
      %c0_51 = arith.constant 0 : index
      %51 = vector.load %arg13[%50, %c0_50, %c0_51] : memref<17x16x128xf32, #tpu.memory_space<vmem>>, vector<1x16x128xf32>
      %52 = vector.shape_cast %51 : vector<1x16x128xf32> to vector<16x128xf32>
      %53 = arith.truncf %52 : vector<16x128xf32> to vector<16x128xbf16>
      %c2_52 = arith.constant 2 : index
      %c0_53 = arith.constant 0 : index
      %c0_54 = arith.constant 0 : index
      %54 = vector.load %arg4[%c2_52, %c0_53, %c0_54] : memref<3x128x128xbf16, #tpu.memory_space<vmem>>, vector<1x128x128xbf16>
      %55 = vector.shape_cast %54 : vector<1x128x128xbf16> to vector<128x128xbf16>
      %cst_55 = arith.constant dense<0.000000e+00> : vector<16x128xf32>
      %56 = tpu.matmul %53, %55, %cst_55 {dimension_numbers = #tpu.dot_dimension_numbers<[1], [0], [0], [1], [0, 0, 1, 1], [], []>} : vector<16x128xbf16>, vector<128x128xbf16>, vector<16x128xf32> -> vector<16x128xf32>
      %57 = arith.addf %47, %56 : vector<16x128xf32>
      %c0_56 = arith.constant 0 : index
      %c0_57 = arith.constant 0 : index
      %58 = vector.load %arg5[%c0_56, %c0_57] : memref<3x128xf32, #tpu.memory_space<vmem>>, vector<1x128xf32>
      %59 = vector.broadcast %58 : vector<1x128xf32> to vector<16x128xf32>
      %60 = arith.addf %57, %59 : vector<16x128xf32>
      %cst_58 = arith.constant 2.000000e-01 : f32
      %61 = vector.broadcast %cst_58 : f32 to vector<16x128xf32>
      %62 = arith.mulf %61, %60 : vector<16x128xf32>
      %63 = arith.maximumf %60, %62 : vector<16x128xf32>
      %c1_59 = arith.constant 1 : index
      %c0_60 = arith.constant 0 : index
      %64 = vector.load %arg5[%c1_59, %c0_60] : memref<3x128xf32, #tpu.memory_space<vmem>>, vector<1x128xf32>
      %65 = vector.broadcast %64 : vector<1x128xf32> to vector<16x128xf32>
      %66 = arith.mulf %63, %65 : vector<16x128xf32>
      %c2_61 = arith.constant 2 : index
      %c0_62 = arith.constant 0 : index
      %67 = vector.load %arg5[%c2_61, %c0_62] : memref<3x128xf32, #tpu.memory_space<vmem>>, vector<1x128xf32>
      %68 = vector.broadcast %67 : vector<1x128xf32> to vector<16x128xf32>
      %69 = arith.addf %66, %68 : vector<16x128xf32>
      %c1_i32_63 = arith.constant 1 : i32
      %70 = arith.addi %29, %c1_i32_63 : i32
      %71 = arith.index_cast %70 : i32 to index
      %c0_64 = arith.constant 0 : index
      %c0_65 = arith.constant 0 : index
      %72 = vector.load %arg14[%71, %c0_64, %c0_65] : memref<9x16x128xf32, #tpu.memory_space<vmem>>, vector<1x16x128xf32>
      %73 = vector.shape_cast %72 : vector<1x16x128xf32> to vector<16x128xf32>
      %74 = vector.shape_cast %69 : vector<16x128xf32> to vector<1x16x128xf32>
      tpu.vector_store %arg14[%71, %c0_64, %c0_65], %74 {strides = array<i32>} : memref<9x16x128xf32, #tpu.memory_space<vmem>>, vector<1x16x128xf32>,
    }
    %c8_i32_13 = arith.constant 8 : i32
    %c0_i32_14 = arith.constant 0 : i32
    %c4_i32 = arith.constant 4 : i32
    %14 = arith.addi %c0_i32_14, %c4_i32 : i32
    %c1_i32_15 = arith.constant 1 : i32
    scf.for %arg17 = %c0_i32_14 to %14 step %c1_i32_15  : i32 {
      %c1_i32_31 = arith.constant 1 : i32
      %28 = arith.muli %arg17, %c1_i32_31 : i32
      %c0_i32_32 = arith.constant 0 : i32
      %29 = arith.addi %c0_i32_32, %28 : i32
      %c2_i32_33 = arith.constant 2 : i32
      %30 = arith.muli %c2_i32_33, %29 : i32
      %31 = arith.index_cast %30 : i32 to index
      %c0_34 = arith.constant 0 : index
      %c0_35 = arith.constant 0 : index
      %32 = vector.load %arg14[%31, %c0_34, %c0_35] : memref<9x16x128xf32, #tpu.memory_space<vmem>>, vector<1x16x128xf32>
      %33 = vector.shape_cast %32 : vector<1x16x128xf32> to vector<16x128xf32>
      %34 = arith.truncf %33 : vector<16x128xf32> to vector<16x128xbf16>
      %c0_36 = arith.constant 0 : index
      %c0_37 = arith.constant 0 : index
      %c0_38 = arith.constant 0 : index
      %35 = vector.load %arg6[%c0_36, %c0_37, %c0_38] : memref<3x128x128xbf16, #tpu.memory_space<vmem>>, vector<1x128x128xbf16>
      %36 = vector.shape_cast %35 : vector<1x128x128xbf16> to vector<128x128xbf16>
      %cst_39 = arith.constant dense<0.000000e+00> : vector<16x128xf32>
      %37 = tpu.matmul %34, %36, %cst_39 {dimension_numbers = #tpu.dot_dimension_numbers<[1], [0], [0], [1], [0, 0, 1, 1], [], []>} : vector<16x128xbf16>, vector<128x128xbf16>, vector<16x128xf32> -> vector<16x128xf32>
      %c2_i32_40 = arith.constant 2 : i32
      %38 = arith.muli %c2_i32_40, %29 : i32
      %c1_i32_41 = arith.constant 1 : i32
      %39 = arith.addi %38, %c1_i32_41 : i32
      %40 = arith.index_cast %39 : i32 to index
      %c0_42 = arith.constant 0 : index
      %c0_43 = arith.constant 0 : index
      %41 = vector.load %arg14[%40, %c0_42, %c0_43] : memref<9x16x128xf32, #tpu.memory_space<vmem>>, vector<1x16x128xf32>
      %42 = vector.shape_cast %41 : vector<1x16x128xf32> to vector<16x128xf32>
      %43 = arith.truncf %42 : vector<16x128xf32> to vector<16x128xbf16>
      %c1_44 = arith.constant 1 : index
      %c0_45 = arith.constant 0 : index
      %c0_46 = arith.constant 0 : index
      %44 = vector.load %arg6[%c1_44, %c0_45, %c0_46] : memref<3x128x128xbf16, #tpu.memory_space<vmem>>, vector<1x128x128xbf16>
      %45 = vector.shape_cast %44 : vector<1x128x128xbf16> to vector<128x128xbf16>
      %cst_47 = arith.constant dense<0.000000e+00> : vector<16x128xf32>
      %46 = tpu.matmul %43, %45, %cst_47 {dimension_numbers = #tpu.dot_dimension_numbers<[1], [0], [0], [1], [0, 0, 1, 1], [], []>} : vector<16x128xbf16>, vector<128x128xbf16>, vector<16x128xf32> -> vector<16x128xf32>
      %47 = arith.addf %37, %46 : vector<16x128xf32>
      %c2_i32_48 = arith.constant 2 : i32
      %48 = arith.muli %c2_i32_48, %29 : i32
      %c2_i32_49 = arith.constant 2 : i32
      %49 = arith.addi %48, %c2_i32_49 : i32
      %50 = arith.index_cast %49 : i32 to index
      %c0_50 = arith.constant 0 : index
      %c0_51 = arith.constant 0 : index
      %51 = vector.load %arg14[%50, %c0_50, %c0_51] : memref<9x16x128xf32, #tpu.memory_space<vmem>>, vector<1x16x128xf32>
      %52 = vector.shape_cast %51 : vector<1x16x128xf32> to vector<16x128xf32>
      %53 = arith.truncf %52 : vector<16x128xf32> to vector<16x128xbf16>
      %c2_52 = arith.constant 2 : index
      %c0_53 = arith.constant 0 : index
      %c0_54 = arith.constant 0 : index
      %54 = vector.load %arg6[%c2_52, %c0_53, %c0_54] : memref<3x128x128xbf16, #tpu.memory_space<vmem>>, vector<1x128x128xbf16>
      %55 = vector.shape_cast %54 : vector<1x128x128xbf16> to vector<128x128xbf16>
      %cst_55 = arith.constant dense<0.000000e+00> : vector<16x128xf32>
      %56 = tpu.matmul %53, %55, %cst_55 {dimension_numbers = #tpu.dot_dimension_numbers<[1], [0], [0], [1], [0, 0, 1, 1], [], []>} : vector<16x128xbf16>, vector<128x128xbf16>, vector<16x128xf32> -> vector<16x128xf32>
      %57 = arith.addf %47, %56 : vector<16x128xf32>
      %c0_56 = arith.constant 0 : index
      %c0_57 = arith.constant 0 : index
      %58 = vector.load %arg7[%c0_56, %c0_57] : memref<3x128xf32, #tpu.memory_space<vmem>>, vector<1x128xf32>
      %59 = vector.broadcast %58 : vector<1x128xf32> to vector<16x128xf32>
      %60 = arith.addf %57, %59 : vector<16x128xf32>
      %cst_58 = arith.constant 2.000000e-01 : f32
      %61 = vector.broadcast %cst_58 : f32 to vector<16x128xf32>
      %62 = arith.mulf %61, %60 : vector<16x128xf32>
      %63 = arith.maximumf %60, %62 : vector<16x128xf32>
      %c1_59 = arith.constant 1 : index
      %c0_60 = arith.constant 0 : index
      %64 = vector.load %arg7[%c1_59, %c0_60] : memref<3x128xf32, #tpu.memory_space<vmem>>, vector<1x128xf32>
      %65 = vector.broadcast %64 : vector<1x128xf32> to vector<16x128xf32>
      %66 = arith.mulf %63, %65 : vector<16x128xf32>
      %c2_61 = arith.constant 2 : index
      %c0_62 = arith.constant 0 : index
      %67 = vector.load %arg7[%c2_61, %c0_62] : memref<3x128xf32, #tpu.memory_space<vmem>>, vector<1x128xf32>
      %68 = vector.broadcast %67 : vector<1x128xf32> to vector<16x128xf32>
      %69 = arith.addf %66, %68 : vector<16x128xf32>
      %c1_i32_63 = arith.constant 1 : i32
      %70 = arith.addi %29, %c1_i32_63 : i32
      %71 = arith.index_cast %70 : i32 to index
      %c0_64 = arith.constant 0 : index
      %c0_65 = arith.constant 0 : index
      %72 = vector.load %arg15[%71, %c0_64, %c0_65] : memref<5x16x128xf32, #tpu.memory_space<vmem>>, vector<1x16x128xf32>
      %73 = vector.shape_cast %72 : vector<1x16x128xf32> to vector<16x128xf32>
      %74 = vector.shape_cast %69 : vector<16x128xf32> to vector<1x16x128xf32>
      tpu.vector_store %arg15[%71, %c0_64, %c0_65], %74 {strides = array<i32>} : memref<5x16x128xf32, #tpu.memory_space<vmem>>, vector<1x16x128xf32>,
    }
    %c4_i32_16 = arith.constant 4 : i32
    %c0_i32_17 = arith.constant 0 : i32
    %c2_i32 = arith.constant 2 : i32
    %15 = arith.addi %c0_i32_17, %c2_i32 : i32
    %c1_i32_18 = arith.constant 1 : i32
    scf.for %arg17 = %c0_i32_17 to %15 step %c1_i32_18  : i32 {
      %c1_i32_31 = arith.constant 1 : i32
      %28 = arith.muli %arg17, %c1_i32_31 : i32
      %c0_i32_32 = arith.constant 0 : i32
      %29 = arith.addi %c0_i32_32, %28 : i32
      %c2_i32_33 = arith.constant 2 : i32
      %30 = arith.muli %c2_i32_33, %29 : i32
      %31 = arith.index_cast %30 : i32 to index
      %c0_34 = arith.constant 0 : index
      %c0_35 = arith.constant 0 : index
      %32 = vector.load %arg15[%31, %c0_34, %c0_35] : memref<5x16x128xf32, #tpu.memory_space<vmem>>, vector<1x16x128xf32>
      %33 = vector.shape_cast %32 : vector<1x16x128xf32> to vector<16x128xf32>
      %34 = arith.truncf %33 : vector<16x128xf32> to vector<16x128xbf16>
      %c0_36 = arith.constant 0 : index
      %c0_37 = arith.constant 0 : index
      %c0_38 = arith.constant 0 : index
      %35 = vector.load %arg8[%c0_36, %c0_37, %c0_38] : memref<3x128x128xbf16, #tpu.memory_space<vmem>>, vector<1x128x128xbf16>
      %36 = vector.shape_cast %35 : vector<1x128x128xbf16> to vector<128x128xbf16>
      %cst_39 = arith.constant dense<0.000000e+00> : vector<16x128xf32>
      %37 = tpu.matmul %34, %36, %cst_39 {dimension_numbers = #tpu.dot_dimension_numbers<[1], [0], [0], [1], [0, 0, 1, 1], [], []>} : vector<16x128xbf16>, vector<128x128xbf16>, vector<16x128xf32> -> vector<16x128xf32>
      %c2_i32_40 = arith.constant 2 : i32
      %38 = arith.muli %c2_i32_40, %29 : i32
      %c1_i32_41 = arith.constant 1 : i32
      %39 = arith.addi %38, %c1_i32_41 : i32
      %40 = arith.index_cast %39 : i32 to index
      %c0_42 = arith.constant 0 : index
      %c0_43 = arith.constant 0 : index
      %41 = vector.load %arg15[%40, %c0_42, %c0_43] : memref<5x16x128xf32, #tpu.memory_space<vmem>>, vector<1x16x128xf32>
      %42 = vector.shape_cast %41 : vector<1x16x128xf32> to vector<16x128xf32>
      %43 = arith.truncf %42 : vector<16x128xf32> to vector<16x128xbf16>
      %c1_44 = arith.constant 1 : index
      %c0_45 = arith.constant 0 : index
      %c0_46 = arith.constant 0 : index
      %44 = vector.load %arg8[%c1_44, %c0_45, %c0_46] : memref<3x128x128xbf16, #tpu.memory_space<vmem>>, vector<1x128x128xbf16>
      %45 = vector.shape_cast %44 : vector<1x128x128xbf16> to vector<128x128xbf16>
      %cst_47 = arith.constant dense<0.000000e+00> : vector<16x128xf32>
      %46 = tpu.matmul %43, %45, %cst_47 {dimension_numbers = #tpu.dot_dimension_numbers<[1], [0], [0], [1], [0, 0, 1, 1], [], []>} : vector<16x128xbf16>, vector<128x128xbf16>, vector<16x128xf32> -> vector<16x128xf32>
      %47 = arith.addf %37, %46 : vector<16x128xf32>
      %c2_i32_48 = arith.constant 2 : i32
      %48 = arith.muli %c2_i32_48, %29 : i32
      %c2_i32_49 = arith.constant 2 : i32
      %49 = arith.addi %48, %c2_i32_49 : i32
      %50 = arith.index_cast %49 : i32 to index
      %c0_50 = arith.constant 0 : index
      %c0_51 = arith.constant 0 : index
      %51 = vector.load %arg15[%50, %c0_50, %c0_51] : memref<5x16x128xf32, #tpu.memory_space<vmem>>, vector<1x16x128xf32>
      %52 = vector.shape_cast %51 : vector<1x16x128xf32> to vector<16x128xf32>
      %53 = arith.truncf %52 : vector<16x128xf32> to vector<16x128xbf16>
      %c2_52 = arith.constant 2 : index
      %c0_53 = arith.constant 0 : index
      %c0_54 = arith.constant 0 : index
      %54 = vector.load %arg8[%c2_52, %c0_53, %c0_54] : memref<3x128x128xbf16, #tpu.memory_space<vmem>>, vector<1x128x128xbf16>
      %55 = vector.shape_cast %54 : vector<1x128x128xbf16> to vector<128x128xbf16>
      %cst_55 = arith.constant dense<0.000000e+00> : vector<16x128xf32>
      %56 = tpu.matmul %53, %55, %cst_55 {dimension_numbers = #tpu.dot_dimension_numbers<[1], [0], [0], [1], [0, 0, 1, 1], [], []>} : vector<16x128xbf16>, vector<128x128xbf16>, vector<16x128xf32> -> vector<16x128xf32>
      %57 = arith.addf %47, %56 : vector<16x128xf32>
      %c0_56 = arith.constant 0 : index
      %c0_57 = arith.constant 0 : index
      %58 = vector.load %arg9[%c0_56, %c0_57] : memref<3x128xf32, #tpu.memory_space<vmem>>, vector<1x128xf32>
      %59 = vector.broadcast %58 : vector<1x128xf32> to vector<16x128xf32>
      %60 = arith.addf %57, %59 : vector<16x128xf32>
      %cst_58 = arith.constant 2.000000e-01 : f32
      %61 = vector.broadcast %cst_58 : f32 to vector<16x128xf32>
      %62 = arith.mulf %61, %60 : vector<16x128xf32>
      %63 = arith.maximumf %60, %62 : vector<16x128xf32>
      %c1_59 = arith.constant 1 : index
      %c0_60 = arith.constant 0 : index
      %64 = vector.load %arg9[%c1_59, %c0_60] : memref<3x128xf32, #tpu.memory_space<vmem>>, vector<1x128xf32>
      %65 = vector.broadcast %64 : vector<1x128xf32> to vector<16x128xf32>
      %66 = arith.mulf %63, %65 : vector<16x128xf32>
      %c2_61 = arith.constant 2 : index
      %c0_62 = arith.constant 0 : index
      %67 = vector.load %arg9[%c2_61, %c0_62] : memref<3x128xf32, #tpu.memory_space<vmem>>, vector<1x128xf32>
      %68 = vector.broadcast %67 : vector<1x128xf32> to vector<16x128xf32>
      %69 = arith.addf %66, %68 : vector<16x128xf32>
      %c1_i32_63 = arith.constant 1 : i32
      %70 = arith.addi %29, %c1_i32_63 : i32
      %71 = arith.index_cast %70 : i32 to index
      %c0_64 = arith.constant 0 : index
      %c0_65 = arith.constant 0 : index
      %72 = vector.load %arg16[%71, %c0_64, %c0_65] : memref<3x16x128xf32, #tpu.memory_space<vmem>>, vector<1x16x128xf32>
      %73 = vector.shape_cast %72 : vector<1x16x128xf32> to vector<16x128xf32>
      %74 = vector.shape_cast %69 : vector<16x128xf32> to vector<1x16x128xf32>
      tpu.vector_store %arg16[%71, %c0_64, %c0_65], %74 {strides = array<i32>} : memref<3x16x128xf32, #tpu.memory_space<vmem>>, vector<1x16x128xf32>,
    }
    %c2_i32_19 = arith.constant 2 : i32
    %c1 = arith.constant 1 : index
    %c0_20 = arith.constant 0 : index
    %c0_21 = arith.constant 0 : index
    %16 = vector.load %arg16[%c1, %c0_20, %c0_21] : memref<3x16x128xf32, #tpu.memory_space<vmem>>, vector<1x16x128xf32>
    %17 = vector.shape_cast %16 : vector<1x16x128xf32> to vector<16x128xf32>
    %c2 = arith.constant 2 : index
    %c0_22 = arith.constant 0 : index
    %c0_23 = arith.constant 0 : index
    %18 = vector.load %arg16[%c2, %c0_22, %c0_23] : memref<3x16x128xf32, #tpu.memory_space<vmem>>, vector<1x16x128xf32>
    %19 = vector.shape_cast %18 : vector<1x16x128xf32> to vector<16x128xf32>
    %20 = tpu.concatenate %17, %19 in 1 : vector<16x128xf32>, vector<16x128xf32> -> vector<16x256xf32>
    %21 = arith.truncf %20 : vector<16x256xf32> to vector<16x256xbf16>
    %c0_24 = arith.constant 0 : index
    %c0_25 = arith.constant 0 : index
    %22 = vector.load %arg10[%c0_24, %c0_25] : memref<256x128xbf16, #tpu.memory_space<vmem>>, vector<256x128xbf16>
    %cst_26 = arith.constant dense<0.000000e+00> : vector<16x128xf32>
    %23 = tpu.matmul %21, %22, %cst_26 {dimension_numbers = #tpu.dot_dimension_numbers<[1], [0], [0], [1], [0, 0, 1, 1], [], []>} : vector<16x256xbf16>, vector<256x128xbf16>, vector<16x128xf32> -> vector<16x128xf32>
    %c0_27 = arith.constant 0 : index
    %c0_28 = arith.constant 0 : index
    %24 = vector.load %arg11[%c0_27, %c0_28] : memref<1x128xf32, #tpu.memory_space<vmem>>, vector<1x128xf32>
    %25 = vector.broadcast %24 : vector<1x128xf32> to vector<16x128xf32>
    %26 = arith.addf %23, %25 : vector<16x128xf32>
    %c0_29 = arith.constant 0 : index
    %c0_30 = arith.constant 0 : index
    %27 = vector.load %arg12[%c0_29, %c0_30] : memref<16x128xf32, #tpu.memory_space<vmem>>, vector<16x128xf32>
    tpu.vector_store %arg12[%c0_29, %c0_30], %26 {strides = array<i32>} : memref<16x128xf32, #tpu.memory_space<vmem>>, vector<16x128xf32>,
    return
  }
  func.func @transform_0(%arg0: i32) -> (i32, i32, i32) {
    %c0_i32 = arith.constant 0 : i32
    %c0_i32_0 = arith.constant 0 : i32
    %c0_i32_1 = arith.constant 0 : i32
    return %c0_i32, %arg0, %c0_i32_0 : i32, i32, i32
  }
  func.func @transform_1(%arg0: i32) -> (i32, i32, i32) {
    %c0_i32 = arith.constant 0 : i32
    %c0_i32_0 = arith.constant 0 : i32
    %c0_i32_1 = arith.constant 0 : i32
    %c0_i32_2 = arith.constant 0 : i32
    return %c0_i32, %c0_i32_0, %c0_i32_1 : i32, i32, i32
  }
  func.func @transform_2(%arg0: i32) -> (i32, i32) {
    %c0_i32 = arith.constant 0 : i32
    %c0_i32_0 = arith.constant 0 : i32
    %c0_i32_1 = arith.constant 0 : i32
    return %c0_i32, %c0_i32_0 : i32, i32
  }
  func.func @transform_3(%arg0: i32) -> (i32, i32, i32) {
    %c0_i32 = arith.constant 0 : i32
    %c0_i32_0 = arith.constant 0 : i32
    %c0_i32_1 = arith.constant 0 : i32
    %c0_i32_2 = arith.constant 0 : i32
    return %c0_i32, %c0_i32_0, %c0_i32_1 : i32, i32, i32
  }
  func.func @transform_4(%arg0: i32) -> (i32, i32) {
    %c0_i32 = arith.constant 0 : i32
    %c0_i32_0 = arith.constant 0 : i32
    %c0_i32_1 = arith.constant 0 : i32
    return %c0_i32, %c0_i32_0 : i32, i32
  }
  func.func @transform_5(%arg0: i32) -> (i32, i32, i32) {
    %c0_i32 = arith.constant 0 : i32
    %c0_i32_0 = arith.constant 0 : i32
    %c0_i32_1 = arith.constant 0 : i32
    %c0_i32_2 = arith.constant 0 : i32
    return %c0_i32, %c0_i32_0, %c0_i32_1 : i32, i32, i32
  }
  func.func @transform_6(%arg0: i32) -> (i32, i32) {
    %c0_i32 = arith.constant 0 : i32
    %c0_i32_0 = arith.constant 0 : i32
    %c0_i32_1 = arith.constant 0 : i32
    return %c0_i32, %c0_i32_0 : i32, i32
  }
  func.func @transform_7(%arg0: i32) -> (i32, i32, i32) {
    %c0_i32 = arith.constant 0 : i32
    %c0_i32_0 = arith.constant 0 : i32
    %c0_i32_1 = arith.constant 0 : i32
    %c0_i32_2 = arith.constant 0 : i32
    return %c0_i32, %c0_i32_0, %c0_i32_1 : i32, i32, i32
  }
  func.func @transform_8(%arg0: i32) -> (i32, i32) {
    %c0_i32 = arith.constant 0 : i32
    %c0_i32_0 = arith.constant 0 : i32
    %c0_i32_1 = arith.constant 0 : i32
    return %c0_i32, %c0_i32_0 : i32, i32
  }
  func.func @transform_9(%arg0: i32) -> (i32, i32) {
    %c0_i32 = arith.constant 0 : i32
    %c0_i32_0 = arith.constant 0 : i32
    %c0_i32_1 = arith.constant 0 : i32
    return %c0_i32, %c0_i32_0 : i32, i32
  }
  func.func @transform_10(%arg0: i32) -> (i32, i32) {
    %c0_i32 = arith.constant 0 : i32
    %c0_i32_0 = arith.constant 0 : i32
    %c0_i32_1 = arith.constant 0 : i32
    return %c0_i32, %c0_i32_0 : i32, i32
  }
  func.func @transform_11(%arg0: i32) -> (i32, i32) {
    %c0_i32 = arith.constant 0 : i32
    %c0_i32_0 = arith.constant 0 : i32
    return %arg0, %c0_i32 : i32, i32
  }
}

</mosaic_0001>

<llo_original>
// kernel: forward.1
$region0: #{forward.1}
  #allocation0 [shape = 'u32[]', space=smem, size = 0x4, offset = 0x4, fixed_abs, tag = 'smem constant byte address 0x4 - core index']
  #allocation1 [shape = 'u32[144,128]{1,0:T(1,128)}', space=vmem, size = 0x12000, scoped, tag = 'internal scratch']
  #allocation2 [shape = 'f32[17,16,128]{2,1,0:T(8,128)}', space=vmem, size = 0x22000, scoped, tag = 'scratch operand']
  #allocation3 [shape = 'f32[9,16,128]{2,1,0:T(8,128)}', space=vmem, size = 0x12000, scoped, tag = 'scratch operand']
  #allocation4 [shape = 'f32[5,16,128]{2,1,0:T(8,128)}', space=vmem, size = 0xa000, scoped, tag = 'scratch operand']
  #allocation5 [shape = 'f32[3,16,128]{2,1,0:T(8,128)}', space=vmem, size = 0x6000, scoped, tag = 'scratch operand']
  %s0 = inlined_call_operand.vmem [shape: bf16[34,16,128], index: 0, kind: input, shape index: {}]
  %s1 = inlined_call_operand.vmem [shape: bf16[3,128,128], index: 1, kind: input, shape index: {}]
  %s2 = inlined_call_operand.vmem [shape: f32[3,128], index: 2, kind: input, shape index: {}]
  %s3 = inlined_call_operand.vmem [shape: bf16[3,128,128], index: 3, kind: input, shape index: {}]
  %s4 = inlined_call_operand.vmem [shape: f32[3,128], index: 4, kind: input, shape index: {}]
  %s5 = inlined_call_operand.hbm [shape: bf16[3,128,128], index: 5, kind: input, shape index: {}]
  %s6 = inlined_call_operand.vmem [shape: f32[3,128], index: 6, kind: input, shape index: {}]
  %s7 = inlined_call_operand.hbm [shape: bf16[3,128,128], index: 7, kind: input, shape index: {}]
  %s8 = inlined_call_operand.vmem [shape: f32[3,128], index: 8, kind: input, shape index: {}]
  %s9 = inlined_call_operand.hbm [shape: bf16[256,128], index: 9, kind: input, shape index: {}]
  %s10 = inlined_call_operand.hbm [shape: f32[1,128], index: 10, kind: input, shape index: {}]
  %s11 = inlined_call_operand.vmem [shape: f32[16,128], index: 11, kind: output, shape index: {}]
  %s12 = sld [smem:[#allocation0]]
  $region98: #{forward.1} parent=0
    _
  %s14 = ssub.s32 1, %s12
  %s15 = scalar_select 0, %s14, %s12
  $region1: #{forward.1} parent=0
    #allocation6 [shape = 'u8[98304]{0}', space=vmem, size = 0x18000, scoped, tag = 'input window, operand 5, single buffered']
    #allocation7 [shape = 's32[1]{0}', space=sflag, size = 0x4, scoped, tag = 'scoped memory for forward.1']
    #allocation8 [shape = 'u8[98304]{0}', space=vmem, size = 0x18000, scoped, tag = 'input window, operand 7, single buffered']
    #allocation9 [shape = 's32[1]{0}', space=sflag, size = 0x4, scoped, tag = 'scoped memory for forward.1']
    #allocation10 [shape = 'u8[65536]{0}', space=vmem, size = 0x10000, scoped, tag = 'input window, operand 9, single buffered']
    #allocation11 [shape = 'u8[512]{0}', space=vmem, size = 0x400, scoped, tag = 'input window, operand 10, single buffered']
    #allocation12 [shape = 's32[1]{0}', space=sflag, size = 0x4, scoped, tag = 'scoped memory for forward.1']
    %16 = vsyncpa [#allocation7], 0
    %17 = vsyncpa [#allocation9], 0
    %18 = vsyncpa [#allocation12], 0
    // Predicated region
    $region2: #{forward.1} parent=1 // pred_check
      _
    $region3: #{forward.1} parent=1 // pred_check_branch
      %20 = sbr.rel (0) target = $region5
    $region4: #{forward.1} parent=1 // pred_region
      _
    $region5: #{forward.1} parent=1 // pred_fallthru
      _
    // Predicated region
    $region6: #{forward.1} parent=1 // pred_check
      _
    $region7: #{forward.1} parent=1 // pred_check_branch
      %22 = sbr.rel (0) target = $region9
    $region8: #{forward.1} parent=1 // pred_region
      _
    $region9: #{forward.1} parent=1 // pred_fallthru
      _
    // Predicated region
    $region10: #{forward.1} parent=1 // pred_check
      _
    $region11: #{forward.1} parent=1 // pred_check_branch
      %24 = sbr.rel (0) target = $region13
    $region12: #{forward.1} parent=1 // pred_region
      _
    $region13: #{forward.1} parent=1 // pred_fallthru
      _
    // Predicated region
    $region14: #{forward.1} parent=1 // pred_check
      _
    $region15: #{forward.1} parent=1 // pred_check_branch
      %26 = sbr.rel (0) target = $region17
    $region16: #{forward.1} parent=1 // pred_region
      _
    $region17: #{forward.1} parent=1 // pred_fallthru
      _
    // Predicated region
    $region18: #{forward.1} parent=1 // pred_check
      _
    $region19: #{forward.1} parent=1 // pred_check_branch
      %28 = sbr.rel (0) target = $region21
    $region20: #{forward.1} parent=1 // pred_region
      _
    $region21: #{forward.1} parent=1 // pred_fallthru
      _
    // Predicated region
    $region22: #{forward.1} parent=1 // pred_check
      _
    $region23: #{forward.1} parent=1 // pred_check_branch
      %30 = sbr.rel (0) target = $region25
    $region24: #{forward.1} parent=1 // pred_region
      %s32 = ssub.s32 3072, 3072
      %33 = vsyncadd [#allocation7], %s32
      %s34 = sshll.u32 [#allocation6], 4
      %s35 = int_to_ptr.vmem [resolvable:$true] %s34
      %40 = dma.hbm_to_vmem [thread:$0]  %s5, 3072, %s35, [#allocation7], 64, 64, 4
    $region25: #{forward.1} parent=1 // pred_fallthru
      _
    // Predicated region
    $region26: #{forward.1} parent=1 // pred_check
      _
    $region27: #{forward.1} parent=1 // pred_check_branch
      %42 = sbr.rel (0) target = $region29
    $region28: #{forward.1} parent=1 // pred_region
      _
    $region29: #{forward.1} parent=1 // pred_fallthru
      _
    // Predicated region
    $region30: #{forward.1} parent=1 // pred_check
      _
    $region31: #{forward.1} parent=1 // pred_check_branch
      %44 = sbr.rel (0) target = $region33
    $region32: #{forward.1} parent=1 // pred_region
      %s46 = ssub.s32 3072, 3072
      %47 = vsyncadd [#allocation9], %s46
      %s48 = sshll.u32 [#allocation8], 4
      %s49 = int_to_ptr.vmem [resolvable:$true] %s48
      %54 = dma.hbm_to_vmem [thread:$0]  %s7, 3072, %s49, [#allocation9], 64, 64, 4
    $region33: #{forward.1} parent=1 // pred_fallthru
      _
    // Predicated region
    $region34: #{forward.1} parent=1 // pred_check
      _
    $region35: #{forward.1} parent=1 // pred_check_branch
      %56 = sbr.rel (0) target = $region37
    $region36: #{forward.1} parent=1 // pred_region
      _
    $region37: #{forward.1} parent=1 // pred_fallthru
      _
    // Predicated region
    $region38: #{forward.1} parent=1 // pred_check
      _
    $region39: #{forward.1} parent=1 // pred_check_branch
      %58 = sbr.rel (0) target = $region41
    $region40: #{forward.1} parent=1 // pred_region
      %s60 = ssub.s32 2048, 2048
      %61 = vsyncadd [#allocation9], %s60
      %s62 = sshll.u32 [#allocation10], 4
      %s63 = int_to_ptr.vmem [resolvable:$true] %s62
      %68 = dma.hbm_to_vmem [thread:$0]  %s9, 2048, %s63, [#allocation9], 64, 64, 4
    $region41: #{forward.1} parent=1 // pred_fallthru
      _
    // Predicated region
    $region42: #{forward.1} parent=1 // pred_check
      _
    $region43: #{forward.1} parent=1 // pred_check_branch
      %70 = sbr.rel (0) target = $region45
    $region44: #{forward.1} parent=1 // pred_region
      %s72 = ssub.s32 16, 16
      %73 = vsyncadd [#allocation12], %s72
      %s75 = sshll.u32 [#allocation11], 4
      %s76 = int_to_ptr.vmem [resolvable:$true] %s75
      %78 = dma.hbm_to_vmem [thread:$0]  %s10, 16, %s76, [#allocation12]
    $region45: #{forward.1} parent=1 // pred_fallthru
      _
    // Predicated region
    $region46: #{forward.1} parent=1 // pred_check
      _
    $region47: #{forward.1} parent=1 // pred_check_branch
      %80 = sbr.rel (0) target = $region49
    $region48: #{forward.1} parent=1 // pred_region
      %81 = dma.done [#allocation7], 3072
    $region49: #{forward.1} parent=1 // pred_fallthru
      _
    // Predicated region
    $region50: #{forward.1} parent=1 // pred_check
      _
    $region51: #{forward.1} parent=1 // pred_check_branch
      %83 = sbr.rel (0) target = $region53
    $region52: #{forward.1} parent=1 // pred_region
      %84 = dma.done [#allocation9], 3072
    $region53: #{forward.1} parent=1 // pred_fallthru
      _
    // Predicated region
    $region54: #{forward.1} parent=1 // pred_check
      _
    $region55: #{forward.1} parent=1 // pred_check_branch
      %86 = sbr.rel (0) target = $region57
    $region56: #{forward.1} parent=1 // pred_region
      %87 = dma.done [#allocation9], 2048
    $region57: #{forward.1} parent=1 // pred_fallthru
      _
    // Predicated region
    $region58: #{forward.1} parent=1 // pred_check
      _
    $region59: #{forward.1} parent=1 // pred_check_branch
      %89 = sbr.rel (0) target = $region61
    $region60: #{forward.1} parent=1 // pred_region
      %90 = dma.done [#allocation12], 16
    $region61: #{forward.1} parent=1 // pred_fallthru
      _
    %92 = vst [vmem:[#allocation2] sm:$0xff] 0.0
    %93 = vst [vmem:[#allocation2 + $0x8] sm:$0xff] 0.0
    %94 = vst [vmem:[#allocation3] sm:$0xff] 0.0
    %95 = vst [vmem:[#allocation3 + $0x8] sm:$0xff] 0.0
    %96 = vst [vmem:[#allocation4] sm:$0xff] 0.0
    %97 = vst [vmem:[#allocation4 + $0x8] sm:$0xff] 0.0
    loop: start=0, step=1, limit=16
    $region62: #{forward.1} parent=1 // loop_pre_header
      _
    $region63: #{forward.1} parent=1 // loop_header
      %s99 = sphi 0, %s103
      %p100 = scmp.ge.s32.totalorder %s99, 16
    $region64: #{forward.1} parent=1 // loop_header_branch
      %102 = sbr.rel (%p100) target = $region68
    $region65: #{forward.1} parent=1 // loop_body
      %s104 = smul.u32 %s99, 2
      %s105 = smul.u32 %s104, 2
      %s106 = smul.addr %s105, 4
      %s107 = scalar_lea.vmem %s0, %s106
      %v108 = vld [vmem:[%s107] sm:$0xf]
      %v109 = vld [vmem:[%s107 + $0x4] sm:$0xf]
      %v110 = vld [vmem:[%s1] sm:$0xf]
      %v111 = vld [vmem:[%s1 + $0x4] sm:$0xf]
      %v112 = vld [vmem:[%s1 + $0x8] sm:$0xf]
      %v113 = vld [vmem:[%s1 + $0xc] sm:$0xf]
      %v114 = vld [vmem:[%s1 + $0x10] sm:$0xf]
      %v115 = vld [vmem:[%s1 + $0x14] sm:$0xf]
      %v116 = vld [vmem:[%s1 + $0x18] sm:$0xf]
      %v117 = vld [vmem:[%s1 + $0x1c] sm:$0xf]
      %v118 = vld [vmem:[%s1 + $0x20] sm:$0xf]
      %v119 = vld [vmem:[%s1 + $0x24] sm:$0xf]
      %v120 = vld [vmem:[%s1 + $0x28] sm:$0xf]
      %v121 = vld [vmem:[%s1 + $0x2c] sm:$0xf]
      %v122 = vld [vmem:[%s1 + $0x30] sm:$0xf]
      %v123 = vld [vmem:[%s1 + $0x34] sm:$0xf]
      %v124 = vld [vmem:[%s1 + $0x38] sm:$0xf]
      %v125 = vld [vmem:[%s1 + $0x3c] sm:$0xf]
      %s126 = sadd.s32 %s104, 1
      %s127 = smul.u32 %s126, 2
      %s128 = smul.addr %s127, 4
      %s129 = scalar_lea.vmem %s0, %s128
      %v130 = vld [vmem:[%s129] sm:$0xf]
      %v131 = vld [vmem:[%s129 + $0x4] sm:$0xf]
      %s132 = scalar_lea.vmem %s1, 64
      %v133 = vld [vmem:[%s132] sm:$0xf]
      %v134 = vld [vmem:[%s132 + $0x4] sm:$0xf]
      %v135 = vld [vmem:[%s132 + $0x8] sm:$0xf]
      %v136 = vld [vmem:[%s132 + $0xc] sm:$0xf]
      %v137 = vld [vmem:[%s132 + $0x10] sm:$0xf]
      %v138 = vld [vmem:[%s132 + $0x14] sm:$0xf]
      %v139 = vld [vmem:[%s132 + $0x18] sm:$0xf]
      %v140 = vld [vmem:[%s132 + $0x1c] sm:$0xf]
      %v141 = vld [vmem:[%s132 + $0x20] sm:$0xf]
      %v142 = vld [vmem:[%s132 + $0x24] sm:$0xf]
      %v143 = vld [vmem:[%s132 + $0x28] sm:$0xf]
      %v144 = vld [vmem:[%s132 + $0x2c] sm:$0xf]
      %v145 = vld [vmem:[%s132 + $0x30] sm:$0xf]
      %v146 = vld [vmem:[%s132 + $0x34] sm:$0xf]
      %v147 = vld [vmem:[%s132 + $0x38] sm:$0xf]
      %v148 = vld [vmem:[%s132 + $0x3c] sm:$0xf]
      %v151 = vunpack.c.l.b16 %v130
      %v152 = vunpack.c.l.b16 %v131
      %v153 = vpack.c.b16 %v152, %v151
      %v171 = vunpack.c.l.b16 %v133
      %v172 = vunpack.c.l.b16 %v134
      %v173 = vunpack.c.l.b16 %v135
      %v174 = vunpack.c.l.b16 %v136
      %v175 = vunpack.c.l.b16 %v137
      %v176 = vunpack.c.l.b16 %v138
      %v177 = vunpack.c.l.b16 %v139
      %v178 = vunpack.c.l.b16 %v140
      %v179 = vunpack.c.l.b16 %v141
      %v180 = vunpack.c.l.b16 %v142
      %v181 = vunpack.c.l.b16 %v143
      %v182 = vunpack.c.l.b16 %v144
      %v183 = vunpack.c.l.b16 %v145
      %v184 = vunpack.c.l.b16 %v146
      %v185 = vunpack.c.l.b16 %v147
      %v186 = vunpack.c.l.b16 %v148
      %v187 = vpack.c.b16 %v172, %v171
      %v188 = vpack.c.b16 %v174, %v173
      %v189 = vpack.c.b16 %v176, %v175
      %v190 = vpack.c.b16 %v178, %v177
      %v191 = vpack.c.b16 %v180, %v179
      %v192 = vpack.c.b16 %v182, %v181
      %v193 = vpack.c.b16 %v184, %v183
      %v194 = vpack.c.b16 %v186, %v185
      %203 = vmatprep.subr.bf16.mxu0 0
      %204 = vmatpush1.bf16.msra.mxu0 %v187
      %205 = vmatprep.subr.bf16.mxu0 0
      %206 = vmatpush1.bf16.msra.mxu0 %v188
      %207 = vmatprep.subr.bf16.mxu0 0
      %208 = vmatpush1.bf16.msra.mxu0 %v189
      %209 = vmatprep.subr.bf16.mxu0 0
      %210 = vmatpush1.bf16.msra.mxu0 %v190
      %211 = vmatprep.subr.bf16.mxu0 0
      %212 = vmatpush1.bf16.msra.mxu0 %v191
      %213 = vmatprep.subr.bf16.mxu0 0
      %214 = vmatpush1.bf16.msra.mxu0 %v192
      %215 = vmatprep.subr.bf16.mxu0 0
      %216 = vmatpush1.bf16.msra.mxu0 %v193
      %217 = vmatprep.subr.bf16.mxu0 0
      %218 = vmatpush1.bf16.msra.mxu0 %v194
      %219 = vmatprep.subr.bf16.mxu0 0
      %220 = vmatpush1.bf16.msra.mxu0 0
      %221 = vmatprep.subr.bf16.mxu0 0
      %222 = vmatpush1.bf16.msra.mxu0 0
      %223 = vmatprep.subr.bf16.mxu0 0
      %224 = vmatpush1.bf16.msra.mxu0 0
      %225 = vmatprep.subr.bf16.mxu0 0
      %226 = vmatpush1.bf16.msra.mxu0 0
      %227 = vmatprep.subr.bf16.mxu0 0
      %228 = vmatpush1.bf16.msra.mxu0 0
      %229 = vmatprep.subr.bf16.mxu0 0
      %230 = vmatpush1.bf16.msra.mxu0 0
      %231 = vmatprep.subr.bf16.mxu0 0
      %232 = vmatpush1.bf16.msra.mxu0 0
      %233 = vmatprep.subr.bf16.mxu0 0
      %234 = vmatpush1.bf16.msra.mxu0 0
      %235 = vmatprep.mubr.bf16.mxu0 0
      %236 = vmatmul.mubr.bf16.gmra.mrb[0].mxu0 %v153
      %v237 = vpop.f32.mrb[0].mxu0
      %v238 = vadd.f32 0.0, %v237
      %v239 = vpop.f32.mrb[0].mxu0
      %v240 = vpop.f32.mrb[0].mxu0
      %v241 = vadd.f32 0.0, %v240
      %v242 = vpop.f32.mrb[0].mxu0
      %243 = vdwg.mxu0
      %v246 = vunpack.c.l.b16 %v108
      %v247 = vunpack.c.l.b16 %v109
      %v248 = vpack.c.b16 %v247, %v246
      %v266 = vunpack.c.l.b16 %v110
      %v267 = vunpack.c.l.b16 %v111
      %v268 = vunpack.c.l.b16 %v112
      %v269 = vunpack.c.l.b16 %v113
      %v270 = vunpack.c.l.b16 %v114
      %v271 = vunpack.c.l.b16 %v115
      %v272 = vunpack.c.l.b16 %v116
      %v273 = vunpack.c.l.b16 %v117
      %v274 = vunpack.c.l.b16 %v118
      %v275 = vunpack.c.l.b16 %v119
      %v276 = vunpack.c.l.b16 %v120
      %v277 = vunpack.c.l.b16 %v121
      %v278 = vunpack.c.l.b16 %v122
      %v279 = vunpack.c.l.b16 %v123
      %v280 = vunpack.c.l.b16 %v124
      %v281 = vunpack.c.l.b16 %v125
      %v282 = vpack.c.b16 %v267, %v266
      %v283 = vpack.c.b16 %v269, %v268
      %v284 = vpack.c.b16 %v271, %v270
      %v285 = vpack.c.b16 %v273, %v272
      %v286 = vpack.c.b16 %v275, %v274
      %v287 = vpack.c.b16 %v277, %v276
      %v288 = vpack.c.b16 %v279, %v278
      %v289 = vpack.c.b16 %v281, %v280
      %298 = vmatprep.subr.bf16.mxu0 0
      %299 = vmatpush1.bf16.msra.mxu0 %v282
      %300 = vmatprep.subr.bf16.mxu0 0
      %301 = vmatpush1.bf16.msra.mxu0 %v283
      %302 = vmatprep.subr.bf16.mxu0 0
      %303 = vmatpush1.bf16.msra.mxu0 %v284
      %304 = vmatprep.subr.bf16.mxu0 0
      %305 = vmatpush1.bf16.msra.mxu0 %v285
      %306 = vmatprep.subr.bf16.mxu0 0
      %307 = vmatpush1.bf16.msra.mxu0 %v286
      %308 = vmatprep.subr.bf16.mxu0 0
      %309 = vmatpush1.bf16.msra.mxu0 %v287
      %310 = vmatprep.subr.bf16.mxu0 0
      %311 = vmatpush1.bf16.msra.mxu0 %v288
      %312 = vmatprep.subr.bf16.mxu0 0
      %313 = vmatpush1.bf16.msra.mxu0 %v289
      %314 = vmatprep.subr.bf16.mxu0 0
      %315 = vmatpush1.bf16.msra.mxu0 0
      %316 = vmatprep.subr.bf16.mxu0 0
      %317 = vmatpush1.bf16.msra.mxu0 0
      %318 = vmatprep.subr.bf16.mxu0 0
      %319 = vmatpush1.bf16.msra.mxu0 0
      %320 = vmatprep.subr.bf16.mxu0 0
      %321 = vmatpush1.bf16.msra.mxu0 0
      %322 = vmatprep.subr.bf16.mxu0 0
      %323 = vmatpush1.bf16.msra.mxu0 0
      %324 = vmatprep.subr.bf16.mxu0 0
      %325 = vmatpush1.bf16.msra.mxu0 0
      %326 = vmatprep.subr.bf16.mxu0 0
      %327 = vmatpush1.bf16.msra.mxu0 0
      %328 = vmatprep.subr.bf16.mxu0 0
      %329 = vmatpush1.bf16.msra.mxu0 0
      %330 = vmatprep.mubr.bf16.mxu0 0
      %331 = vmatmul.mubr.bf16.gmra.mrb[0].mxu0 %v248
      %v332 = vpop.f32.mrb[0].mxu0
      %v333 = vadd.f32 %v238, %v332
      %v334 = vpop.f32.mrb[0].mxu0
      %v335 = vpop.f32.mrb[0].mxu0
      %v336 = vadd.f32 %v241, %v335
      %v337 = vpop.f32.mrb[0].mxu0
      %338 = vdwg.mxu0
      %s339 = sadd.s32 %s104, 2
      %s340 = smul.u32 %s339, 2
      %s341 = smul.addr %s340, 4
      %s342 = scalar_lea.vmem %s0, %s341
      %v343 = vld [vmem:[%s342] sm:$0xf]
      %v344 = vld [vmem:[%s342 + $0x4] sm:$0xf]
      %s345 = scalar_lea.vmem %s1, 128
      %v346 = vld [vmem:[%s345] sm:$0xf]
      %v347 = vld [vmem:[%s345 + $0x4] sm:$0xf]
      %v348 = vld [vmem:[%s345 + $0x8] sm:$0xf]
      %v349 = vld [vmem:[%s345 + $0xc] sm:$0xf]
      %v350 = vld [vmem:[%s345 + $0x10] sm:$0xf]
      %v351 = vld [vmem:[%s345 + $0x14] sm:$0xf]
      %v352 = vld [vmem:[%s345 + $0x18] sm:$0xf]
      %v353 = vld [vmem:[%s345 + $0x1c] sm:$0xf]
      %v354 = vld [vmem:[%s345 + $0x20] sm:$0xf]
      %v355 = vld [vmem:[%s345 + $0x24] sm:$0xf]
      %v356 = vld [vmem:[%s345 + $0x28] sm:$0xf]
      %v357 = vld [vmem:[%s345 + $0x2c] sm:$0xf]
      %v358 = vld [vmem:[%s345 + $0x30] sm:$0xf]
      %v359 = vld [vmem:[%s345 + $0x34] sm:$0xf]
      %v360 = vld [vmem:[%s345 + $0x38] sm:$0xf]
      %v361 = vld [vmem:[%s345 + $0x3c] sm:$0xf]
      %v364 = vunpack.c.l.b16 %v343
      %v365 = vunpack.c.l.b16 %v344
      %v366 = vpack.c.b16 %v365, %v364
      %v384 = vunpack.c.l.b16 %v346
      %v385 = vunpack.c.l.b16 %v347
      %v386 = vunpack.c.l.b16 %v348
      %v387 = vunpack.c.l.b16 %v349
      %v388 = vunpack.c.l.b16 %v350
      %v389 = vunpack.c.l.b16 %v351
      %v390 = vunpack.c.l.b16 %v352
      %v391 = vunpack.c.l.b16 %v353
      %v392 = vunpack.c.l.b16 %v354
      %v393 = vunpack.c.l.b16 %v355
      %v394 = vunpack.c.l.b16 %v356
      %v395 = vunpack.c.l.b16 %v357
      %v396 = vunpack.c.l.b16 %v358
      %v397 = vunpack.c.l.b16 %v359
      %v398 = vunpack.c.l.b16 %v360
      %v399 = vunpack.c.l.b16 %v361
      %v400 = vpack.c.b16 %v385, %v384
      %v401 = vpack.c.b16 %v387, %v386
      %v402 = vpack.c.b16 %v389, %v388
      %v403 = vpack.c.b16 %v391, %v390
      %v404 = vpack.c.b16 %v393, %v392
      %v405 = vpack.c.b16 %v395, %v394
      %v406 = vpack.c.b16 %v397, %v396
      %v407 = vpack.c.b16 %v399, %v398
      %416 = vmatprep.subr.bf16.mxu0 0
      %417 = vmatpush1.bf16.msra.mxu0 %v400
      %418 = vmatprep.subr.bf16.mxu0 0
      %419 = vmatpush1.bf16.msra.mxu0 %v401
      %420 = vmatprep.subr.bf16.mxu0 0
      %421 = vmatpush1.bf16.msra.mxu0 %v402
      %422 = vmatprep.subr.bf16.mxu0 0
      %423 = vmatpush1.bf16.msra.mxu0 %v403
      %424 = vmatprep.subr.bf16.mxu0 0
      %425 = vmatpush1.bf16.msra.mxu0 %v404
      %426 = vmatprep.subr.bf16.mxu0 0
      %427 = vmatpush1.bf16.msra.mxu0 %v405
      %428 = vmatprep.subr.bf16.mxu0 0
      %429 = vmatpush1.bf16.msra.mxu0 %v406
      %430 = vmatprep.subr.bf16.mxu0 0
      %431 = vmatpush1.bf16.msra.mxu0 %v407
      %432 = vmatprep.subr.bf16.mxu0 0
      %433 = vmatpush1.bf16.msra.mxu0 0
      %434 = vmatprep.subr.bf16.mxu0 0
      %435 = vmatpush1.bf16.msra.mxu0 0
      %436 = vmatprep.subr.bf16.mxu0 0
      %437 = vmatpush1.bf16.msra.mxu0 0
      %438 = vmatprep.subr.bf16.mxu0 0
      %439 = vmatpush1.bf16.msra.mxu0 0
      %440 = vmatprep.subr.bf16.mxu0 0
      %441 = vmatpush1.bf16.msra.mxu0 0
      %442 = vmatprep.subr.bf16.mxu0 0
      %443 = vmatpush1.bf16.msra.mxu0 0
      %444 = vmatprep.subr.bf16.mxu0 0
      %445 = vmatpush1.bf16.msra.mxu0 0
      %446 = vmatprep.subr.bf16.mxu0 0
      %447 = vmatpush1.bf16.msra.mxu0 0
      %448 = vmatprep.mubr.bf16.mxu0 0
      %449 = vmatmul.mubr.bf16.gmra.mrb[0].mxu0 %v366
      %v450 = vpop.f32.mrb[0].mxu0
      %v451 = vadd.f32 0.0, %v450
      %v452 = vpop.f32.mrb[0].mxu0
      %v453 = vpop.f32.mrb[0].mxu0
      %v454 = vadd.f32 0.0, %v453
      %v455 = vpop.f32.mrb[0].mxu0
      %456 = vdwg.mxu0
      %v457 = vadd.f32 %v333, %v451
      %v458 = vadd.f32 %v336, %v454
      %v459 = vld [vmem:[%s2] sm:$0x1]
      %v460 = vlaneseq
      %v461 = vshrl.u32 %v460, 7
      %v462 = vsub.s32 0, %v461
      %v463 = vrot.slane %v459, %v462
      %v464 = vadd.f32 %v457, %v463
      %v465 = vadd.f32 %v458, %v463
      %v466 = vmul.f32 %v464, 0.2
      %v467 = vmul.f32 %v465, 0.2
      %v468 = vmax.f32 %v464, %v466
      %v469 = vmax.f32 %v465, %v467
      %v470 = vld [vmem:[%s2 + $0x1] sm:$0x1]
      %v471 = vlaneseq
      %v472 = vshrl.u32 %v471, 7
      %v473 = vsub.s32 0, %v472
      %v474 = vrot.slane %v470, %v473
      %v475 = vmul.f32 %v468, %v474
      %v476 = vmul.f32 %v469, %v474
      %v477 = vld [vmem:[%s2 + $0x2] sm:$0x1]
      %v478 = vlaneseq
      %v479 = vshrl.u32 %v478, 7
      %v480 = vsub.s32 0, %v479
      %v481 = vrot.slane %v477, %v480
      %v482 = vadd.f32 %v475, %v481
      %v483 = vadd.f32 %v476, %v481
      %s484 = sadd.s32 %s99, 1
      %s485 = smul.u32 %s484, 16
      %s486 = scalar_lea.vmem [#allocation2], %s485
      %487 = vst [vmem:[%s486] sm:$0xff] %v482
      %488 = vst [vmem:[%s486 + $0x8] sm:$0xff] %v483
    $region66: #{forward.1} parent=1 // loop_footer
      %s103 = sadd.s32 1, %s99
    $region67: #{forward.1} parent=1 // loop_footer_branch
      %98 = sbr.rel target = $region63
    $region68: #{forward.1} parent=1 // loop_exit
      _
    loop: start=0, step=1, limit=8
    $region69: #{forward.1} parent=1 // loop_pre_header
      _
    $region70: #{forward.1} parent=1 // loop_header
      %s490 = sphi 0, %s494
      %p491 = scmp.ge.s32.totalorder %s490, 8
    $region71: #{forward.1} parent=1 // loop_header_branch
      %493 = sbr.rel (%p491) target = $region75
    $region72: #{forward.1} parent=1 // loop_body
      %s495 = smul.u32 %s490, 2
      %s496 = smul.u32 %s495, 16
      %s497 = scalar_lea.vmem [#allocation2], %s496
      %v498 = vld [vmem:[%s497] sm:$0xff]
      %v499 = vld [vmem:[%s497 + $0x8] sm:$0xff]
      %v500 = vpack.c.bf16 %v499, %v498
      %v501 = vld [vmem:[%s3] sm:$0xf]
      %v502 = vld [vmem:[%s3 + $0x4] sm:$0xf]
      %v503 = vld [vmem:[%s3 + $0x8] sm:$0xf]
      %v504 = vld [vmem:[%s3 + $0xc] sm:$0xf]
      %v505 = vld [vmem:[%s3 + $0x10] sm:$0xf]
      %v506 = vld [vmem:[%s3 + $0x14] sm:$0xf]
      %v507 = vld [vmem:[%s3 + $0x18] sm:$0xf]
      %v508 = vld [vmem:[%s3 + $0x1c] sm:$0xf]
      %v509 = vld [vmem:[%s3 + $0x20] sm:$0xf]
      %v510 = vld [vmem:[%s3 + $0x24] sm:$0xf]
      %v511 = vld [vmem:[%s3 + $0x28] sm:$0xf]
      %v512 = vld [vmem:[%s3 + $0x2c] sm:$0xf]
      %v513 = vld [vmem:[%s3 + $0x30] sm:$0xf]
      %v514 = vld [vmem:[%s3 + $0x34] sm:$0xf]
      %v515 = vld [vmem:[%s3 + $0x38] sm:$0xf]
      %v516 = vld [vmem:[%s3 + $0x3c] sm:$0xf]
      %s517 = sadd.s32 %s495, 1
      %s518 = smul.u32 %s517, 16
      %s519 = scalar_lea.vmem [#allocation2], %s518
      %v520 = vld [vmem:[%s519] sm:$0xff]
      %v521 = vld [vmem:[%s519 + $0x8] sm:$0xff]
      %v522 = vpack.c.bf16 %v521, %v520
      %s523 = scalar_lea.vmem %s3, 64
      %v524 = vld [vmem:[%s523] sm:$0xf]
      %v525 = vld [vmem:[%s523 + $0x4] sm:$0xf]
      %v526 = vld [vmem:[%s523 + $0x8] sm:$0xf]
      %v527 = vld [vmem:[%s523 + $0xc] sm:$0xf]
      %v528 = vld [vmem:[%s523 + $0x10] sm:$0xf]
      %v529 = vld [vmem:[%s523 + $0x14] sm:$0xf]
      %v530 = vld [vmem:[%s523 + $0x18] sm:$0xf]
      %v531 = vld [vmem:[%s523 + $0x1c] sm:$0xf]
      %v532 = vld [vmem:[%s523 + $0x20] sm:$0xf]
      %v533 = vld [vmem:[%s523 + $0x24] sm:$0xf]
      %v534 = vld [vmem:[%s523 + $0x28] sm:$0xf]
      %v535 = vld [vmem:[%s523 + $0x2c] sm:$0xf]
      %v536 = vld [vmem:[%s523 + $0x30] sm:$0xf]
      %v537 = vld [vmem:[%s523 + $0x34] sm:$0xf]
      %v538 = vld [vmem:[%s523 + $0x38] sm:$0xf]
      %v539 = vld [vmem:[%s523 + $0x3c] sm:$0xf]
      %v556 = vunpack.c.l.b16 %v524
      %v557 = vunpack.c.l.b16 %v525
      %v558 = vunpack.c.l.b16 %v526
      %v559 = vunpack.c.l.b16 %v527
      %v560 = vunpack.c.l.b16 %v528
      %v561 = vunpack.c.l.b16 %v529
      %v562 = vunpack.c.l.b16 %v530
      %v563 = vunpack.c.l.b16 %v531
      %v564 = vunpack.c.l.b16 %v532
      %v565 = vunpack.c.l.b16 %v533
      %v566 = vunpack.c.l.b16 %v534
      %v567 = vunpack.c.l.b16 %v535
      %v568 = vunpack.c.l.b16 %v536
      %v569 = vunpack.c.l.b16 %v537
      %v570 = vunpack.c.l.b16 %v538
      %v571 = vunpack.c.l.b16 %v539
      %v572 = vpack.c.b16 %v557, %v556
      %v573 = vpack.c.b16 %v559, %v558
      %v574 = vpack.c.b16 %v561, %v560
      %v575 = vpack.c.b16 %v563, %v562
      %v576 = vpack.c.b16 %v565, %v564
      %v577 = vpack.c.b16 %v567, %v566
      %v578 = vpack.c.b16 %v569, %v568
      %v579 = vpack.c.b16 %v571, %v570
      %588 = vmatprep.subr.bf16.mxu0 0
      %589 = vmatpush1.bf16.msra.mxu0 %v572
      %590 = vmatprep.subr.bf16.mxu0 0
      %591 = vmatpush1.bf16.msra.mxu0 %v573
      %592 = vmatprep.subr.bf16.mxu0 0
      %593 = vmatpush1.bf16.msra.mxu0 %v574
      %594 = vmatprep.subr.bf16.mxu0 0
      %595 = vmatpush1.bf16.msra.mxu0 %v575
      %596 = vmatprep.subr.bf16.mxu0 0
      %597 = vmatpush1.bf16.msra.mxu0 %v576
      %598 = vmatprep.subr.bf16.mxu0 0
      %599 = vmatpush1.bf16.msra.mxu0 %v577
      %600 = vmatprep.subr.bf16.mxu0 0
      %601 = vmatpush1.bf16.msra.mxu0 %v578
      %602 = vmatprep.subr.bf16.mxu0 0
      %603 = vmatpush1.bf16.msra.mxu0 %v579
      %604 = vmatprep.subr.bf16.mxu0 0
      %605 = vmatpush1.bf16.msra.mxu0 0
      %606 = vmatprep.subr.bf16.mxu0 0
      %607 = vmatpush1.bf16.msra.mxu0 0
      %608 = vmatprep.subr.bf16.mxu0 0
      %609 = vmatpush1.bf16.msra.mxu0 0
      %610 = vmatprep.subr.bf16.mxu0 0
      %611 = vmatpush1.bf16.msra.mxu0 0
      %612 = vmatprep.subr.bf16.mxu0 0
      %613 = vmatpush1.bf16.msra.mxu0 0
      %614 = vmatprep.subr.bf16.mxu0 0
      %615 = vmatpush1.bf16.msra.mxu0 0
      %616 = vmatprep.subr.bf16.mxu0 0
      %617 = vmatpush1.bf16.msra.mxu0 0
      %618 = vmatprep.subr.bf16.mxu0 0
      %619 = vmatpush1.bf16.msra.mxu0 0
      %620 = vmatprep.mubr.bf16.mxu0 0
      %621 = vmatmul.mubr.bf16.gmra.mrb[0].mxu0 %v522
      %v622 = vpop.f32.mrb[0].mxu0
      %v623 = vadd.f32 0.0, %v622
      %v624 = vpop.f32.mrb[0].mxu0
      %v625 = vpop.f32.mrb[0].mxu0
      %v626 = vadd.f32 0.0, %v625
      %v627 = vpop.f32.mrb[0].mxu0
      %628 = vdwg.mxu0
      %v645 = vunpack.c.l.b16 %v501
      %v646 = vunpack.c.l.b16 %v502
      %v647 = vunpack.c.l.b16 %v503
      %v648 = vunpack.c.l.b16 %v504
      %v649 = vunpack.c.l.b16 %v505
      %v650 = vunpack.c.l.b16 %v506
      %v651 = vunpack.c.l.b16 %v507
      %v652 = vunpack.c.l.b16 %v508
      %v653 = vunpack.c.l.b16 %v509
      %v654 = vunpack.c.l.b16 %v510
      %v655 = vunpack.c.l.b16 %v511
      %v656 = vunpack.c.l.b16 %v512
      %v657 = vunpack.c.l.b16 %v513
      %v658 = vunpack.c.l.b16 %v514
      %v659 = vunpack.c.l.b16 %v515
      %v660 = vunpack.c.l.b16 %v516
      %v661 = vpack.c.b16 %v646, %v645
      %v662 = vpack.c.b16 %v648, %v647
      %v663 = vpack.c.b16 %v650, %v649
      %v664 = vpack.c.b16 %v652, %v651
      %v665 = vpack.c.b16 %v654, %v653
      %v666 = vpack.c.b16 %v656, %v655
      %v667 = vpack.c.b16 %v658, %v657
      %v668 = vpack.c.b16 %v660, %v659
      %677 = vmatprep.subr.bf16.mxu0 0
      %678 = vmatpush1.bf16.msra.mxu0 %v661
      %679 = vmatprep.subr.bf16.mxu0 0
      %680 = vmatpush1.bf16.msra.mxu0 %v662
      %681 = vmatprep.subr.bf16.mxu0 0
      %682 = vmatpush1.bf16.msra.mxu0 %v663
      %683 = vmatprep.subr.bf16.mxu0 0
      %684 = vmatpush1.bf16.msra.mxu0 %v664
      %685 = vmatprep.subr.bf16.mxu0 0
      %686 = vmatpush1.bf16.msra.mxu0 %v665
      %687 = vmatprep.subr.bf16.mxu0 0
      %688 = vmatpush1.bf16.msra.mxu0 %v666
      %689 = vmatprep.subr.bf16.mxu0 0
      %690 = vmatpush1.bf16.msra.mxu0 %v667
      %691 = vmatprep.subr.bf16.mxu0 0
      %692 = vmatpush1.bf16.msra.mxu0 %v668
      %693 = vmatprep.subr.bf16.mxu0 0
      %694 = vmatpush1.bf16.msra.mxu0 0
      %695 = vmatprep.subr.bf16.mxu0 0
      %696 = vmatpush1.bf16.msra.mxu0 0
      %697 = vmatprep.subr.bf16.mxu0 0
      %698 = vmatpush1.bf16.msra.mxu0 0
      %699 = vmatprep.subr.bf16.mxu0 0
      %700 = vmatpush1.bf16.msra.mxu0 0
      %701 = vmatprep.subr.bf16.mxu0 0
      %702 = vmatpush1.bf16.msra.mxu0 0
      %703 = vmatprep.subr.bf16.mxu0 0
      %704 = vmatpush1.bf16.msra.mxu0 0
      %705 = vmatprep.subr.bf16.mxu0 0
      %706 = vmatpush1.bf16.msra.mxu0 0
      %707 = vmatprep.subr.bf16.mxu0 0
      %708 = vmatpush1.bf16.msra.mxu0 0
      %709 = vmatprep.mubr.bf16.mxu0 0
      %710 = vmatmul.mubr.bf16.gmra.mrb[0].mxu0 %v500
      %v711 = vpop.f32.mrb[0].mxu0
      %v712 = vadd.f32 %v623, %v711
      %v713 = vpop.f32.mrb[0].mxu0
      %v714 = vpop.f32.mrb[0].mxu0
      %v715 = vadd.f32 %v626, %v714
      %v716 = vpop.f32.mrb[0].mxu0
      %717 = vdwg.mxu0
      %s718 = sadd.s32 %s495, 2
      %s719 = smul.u32 %s718, 16
      %s720 = scalar_lea.vmem [#allocation2], %s719
      %v721 = vld [vmem:[%s720] sm:$0xff]
      %v722 = vld [vmem:[%s720 + $0x8] sm:$0xff]
      %v723 = vpack.c.bf16 %v722, %v721
      %s724 = scalar_lea.vmem %s3, 128
      %v725 = vld [vmem:[%s724] sm:$0xf]
      %v726 = vld [vmem:[%s724 + $0x4] sm:$0xf]
      %v727 = vld [vmem:[%s724 + $0x8] sm:$0xf]
      %v728 = vld [vmem:[%s724 + $0xc] sm:$0xf]
      %v729 = vld [vmem:[%s724 + $0x10] sm:$0xf]
      %v730 = vld [vmem:[%s724 + $0x14] sm:$0xf]
      %v731 = vld [vmem:[%s724 + $0x18] sm:$0xf]
      %v732 = vld [vmem:[%s724 + $0x1c] sm:$0xf]
      %v733 = vld [vmem:[%s724 + $0x20] sm:$0xf]
      %v734 = vld [vmem:[%s724 + $0x24] sm:$0xf]
      %v735 = vld [vmem:[%s724 + $0x28] sm:$0xf]
      %v736 = vld [vmem:[%s724 + $0x2c] sm:$0xf]
      %v737 = vld [vmem:[%s724 + $0x30] sm:$0xf]
      %v738 = vld [vmem:[%s724 + $0x34] sm:$0xf]
      %v739 = vld [vmem:[%s724 + $0x38] sm:$0xf]
      %v740 = vld [vmem:[%s724 + $0x3c] sm:$0xf]
      %v757 = vunpack.c.l.b16 %v725
      %v758 = vunpack.c.l.b16 %v726
      %v759 = vunpack.c.l.b16 %v727
      %v760 = vunpack.c.l.b16 %v728
      %v761 = vunpack.c.l.b16 %v729
      %v762 = vunpack.c.l.b16 %v730
      %v763 = vunpack.c.l.b16 %v731
      %v764 = vunpack.c.l.b16 %v732
      %v765 = vunpack.c.l.b16 %v733
      %v766 = vunpack.c.l.b16 %v734
      %v767 = vunpack.c.l.b16 %v735
      %v768 = vunpack.c.l.b16 %v736
      %v769 = vunpack.c.l.b16 %v737
      %v770 = vunpack.c.l.b16 %v738
      %v771 = vunpack.c.l.b16 %v739
      %v772 = vunpack.c.l.b16 %v740
      %v773 = vpack.c.b16 %v758, %v757
      %v774 = vpack.c.b16 %v760, %v759
      %v775 = vpack.c.b16 %v762, %v761
      %v776 = vpack.c.b16 %v764, %v763
      %v777 = vpack.c.b16 %v766, %v765
      %v778 = vpack.c.b16 %v768, %v767
      %v779 = vpack.c.b16 %v770, %v769
      %v780 = vpack.c.b16 %v772, %v771
      %789 = vmatprep.subr.bf16.mxu0 0
      %790 = vmatpush1.bf16.msra.mxu0 %v773
      %791 = vmatprep.subr.bf16.mxu0 0
      %792 = vmatpush1.bf16.msra.mxu0 %v774
      %793 = vmatprep.subr.bf16.mxu0 0
      %794 = vmatpush1.bf16.msra.mxu0 %v775
      %795 = vmatprep.subr.bf16.mxu0 0
      %796 = vmatpush1.bf16.msra.mxu0 %v776
      %797 = vmatprep.subr.bf16.mxu0 0
      %798 = vmatpush1.bf16.msra.mxu0 %v777
      %799 = vmatprep.subr.bf16.mxu0 0
      %800 = vmatpush1.bf16.msra.mxu0 %v778
      %801 = vmatprep.subr.bf16.mxu0 0
      %802 = vmatpush1.bf16.msra.mxu0 %v779
      %803 = vmatprep.subr.bf16.mxu0 0
      %804 = vmatpush1.bf16.msra.mxu0 %v780
      %805 = vmatprep.subr.bf16.mxu0 0
      %806 = vmatpush1.bf16.msra.mxu0 0
      %807 = vmatprep.subr.bf16.mxu0 0
      %808 = vmatpush1.bf16.msra.mxu0 0
      %809 = vmatprep.subr.bf16.mxu0 0
      %810 = vmatpush1.bf16.msra.mxu0 0
      %811 = vmatprep.subr.bf16.mxu0 0
      %812 = vmatpush1.bf16.msra.mxu0 0
      %813 = vmatprep.subr.bf16.mxu0 0
      %814 = vmatpush1.bf16.msra.mxu0 0
      %815 = vmatprep.subr.bf16.mxu0 0
      %816 = vmatpush1.bf16.msra.mxu0 0
      %817 = vmatprep.subr.bf16.mxu0 0
      %818 = vmatpush1.bf16.msra.mxu0 0
      %819 = vmatprep.subr.bf16.mxu0 0
      %820 = vmatpush1.bf16.msra.mxu0 0
      %821 = vmatprep.mubr.bf16.mxu0 0
      %822 = vmatmul.mubr.bf16.gmra.mrb[0].mxu0 %v723
      %v823 = vpop.f32.mrb[0].mxu0
      %v824 = vadd.f32 0.0, %v823
      %v825 = vpop.f32.mrb[0].mxu0
      %v826 = vpop.f32.mrb[0].mxu0
      %v827 = vadd.f32 0.0, %v826
      %v828 = vpop.f32.mrb[0].mxu0
      %829 = vdwg.mxu0
      %v830 = vadd.f32 %v712, %v824
      %v831 = vadd.f32 %v715, %v827
      %v832 = vld [vmem:[%s4] sm:$0x1]
      %v833 = vlaneseq
      %v834 = vshrl.u32 %v833, 7
      %v835 = vsub.s32 0, %v834
      %v836 = vrot.slane %v832, %v835
      %v837 = vadd.f32 %v830, %v836
      %v838 = vadd.f32 %v831, %v836
      %v839 = vmul.f32 %v837, 0.2
      %v840 = vmul.f32 %v838, 0.2
      %v841 = vmax.f32 %v837, %v839
      %v842 = vmax.f32 %v838, %v840
      %v843 = vld [vmem:[%s4 + $0x1] sm:$0x1]
      %v844 = vlaneseq
      %v845 = vshrl.u32 %v844, 7
      %v846 = vsub.s32 0, %v845
      %v847 = vrot.slane %v843, %v846
      %v848 = vmul.f32 %v841, %v847
      %v849 = vmul.f32 %v842, %v847
      %v850 = vld [vmem:[%s4 + $0x2] sm:$0x1]
      %v851 = vlaneseq
      %v852 = vshrl.u32 %v851, 7
      %v853 = vsub.s32 0, %v852
      %v854 = vrot.slane %v850, %v853
      %v855 = vadd.f32 %v848, %v854
      %v856 = vadd.f32 %v849, %v854
      %s857 = sadd.s32 %s490, 1
      %s858 = smul.u32 %s857, 16
      %s859 = scalar_lea.vmem [#allocation3], %s858
      %860 = vst [vmem:[%s859] sm:$0xff] %v855
      %861 = vst [vmem:[%s859 + $0x8] sm:$0xff] %v856
    $region73: #{forward.1} parent=1 // loop_footer
      %s494 = sadd.s32 1, %s490
    $region74: #{forward.1} parent=1 // loop_footer_branch
      %489 = sbr.rel target = $region70
    $region75: #{forward.1} parent=1 // loop_exit
      _
    loop: start=0, step=1, limit=4
    $region76: #{forward.1} parent=1 // loop_pre_header
      _
    $region77: #{forward.1} parent=1 // loop_header
      %s863 = sphi 0, %s867
      %p864 = scmp.ge.s32.totalorder %s863, 4
    $region78: #{forward.1} parent=1 // loop_header_branch
      %866 = sbr.rel (%p864) target = $region82
    $region79: #{forward.1} parent=1 // loop_body
      %s868 = smul.u32 %s863, 2
      %s869 = smul.u32 %s868, 16
      %s870 = scalar_lea.vmem [#allocation3], %s869
      %v871 = vld [vmem:[%s870] sm:$0xff]
      %v872 = vld [vmem:[%s870 + $0x8] sm:$0xff]
      %v873 = vpack.c.bf16 %v872, %v871
      %v874 = vld [vmem:[#allocation6] sm:$0xf]
      %v875 = vld [vmem:[#allocation6 + $0x4] sm:$0xf]
      %v876 = vld [vmem:[#allocation6 + $0x8] sm:$0xf]
      %v877 = vld [vmem:[#allocation6 + $0xc] sm:$0xf]
      %v878 = vld [vmem:[#allocation6 + $0x10] sm:$0xf]
      %v879 = vld [vmem:[#allocation6 + $0x14] sm:$0xf]
      %v880 = vld [vmem:[#allocation6 + $0x18] sm:$0xf]
      %v881 = vld [vmem:[#allocation6 + $0x1c] sm:$0xf]
      %v882 = vld [vmem:[#allocation6 + $0x20] sm:$0xf]
      %v883 = vld [vmem:[#allocation6 + $0x24] sm:$0xf]
      %v884 = vld [vmem:[#allocation6 + $0x28] sm:$0xf]
      %v885 = vld [vmem:[#allocation6 + $0x2c] sm:$0xf]
      %v886 = vld [vmem:[#allocation6 + $0x30] sm:$0xf]
      %v887 = vld [vmem:[#allocation6 + $0x34] sm:$0xf]
      %v888 = vld [vmem:[#allocation6 + $0x38] sm:$0xf]
      %v889 = vld [vmem:[#allocation6 + $0x3c] sm:$0xf]
      %s890 = sadd.s32 %s868, 1
      %s891 = smul.u32 %s890, 16
      %s892 = scalar_lea.vmem [#allocation3], %s891
      %v893 = vld [vmem:[%s892] sm:$0xff]
      %v894 = vld [vmem:[%s892 + $0x8] sm:$0xff]
      %v895 = vpack.c.bf16 %v894, %v893
      %s896 = scalar_lea.vmem [#allocation6], 64
      %v897 = vld [vmem:[%s896] sm:$0xf]
      %v898 = vld [vmem:[%s896 + $0x4] sm:$0xf]
      %v899 = vld [vmem:[%s896 + $0x8] sm:$0xf]
      %v900 = vld [vmem:[%s896 + $0xc] sm:$0xf]
      %v901 = vld [vmem:[%s896 + $0x10] sm:$0xf]
      %v902 = vld [vmem:[%s896 + $0x14] sm:$0xf]
      %v903 = vld [vmem:[%s896 + $0x18] sm:$0xf]
      %v904 = vld [vmem:[%s896 + $0x1c] sm:$0xf]
      %v905 = vld [vmem:[%s896 + $0x20] sm:$0xf]
      %v906 = vld [vmem:[%s896 + $0x24] sm:$0xf]
      %v907 = vld [vmem:[%s896 + $0x28] sm:$0xf]
      %v908 = vld [vmem:[%s896 + $0x2c] sm:$0xf]
      %v909 = vld [vmem:[%s896 + $0x30] sm:$0xf]
      %v910 = vld [vmem:[%s896 + $0x34] sm:$0xf]
      %v911 = vld [vmem:[%s896 + $0x38] sm:$0xf]
      %v912 = vld [vmem:[%s896 + $0x3c] sm:$0xf]
      %v929 = vunpack.c.l.b16 %v897
      %v930 = vunpack.c.l.b16 %v898
      %v931 = vunpack.c.l.b16 %v899
      %v932 = vunpack.c.l.b16 %v900
      %v933 = vunpack.c.l.b16 %v901
      %v934 = vunpack.c.l.b16 %v902
      %v935 = vunpack.c.l.b16 %v903
      %v936 = vunpack.c.l.b16 %v904
      %v937 = vunpack.c.l.b16 %v905
      %v938 = vunpack.c.l.b16 %v906
      %v939 = vunpack.c.l.b16 %v907
      %v940 = vunpack.c.l.b16 %v908
      %v941 = vunpack.c.l.b16 %v909
      %v942 = vunpack.c.l.b16 %v910
      %v943 = vunpack.c.l.b16 %v911
      %v944 = vunpack.c.l.b16 %v912
      %v945 = vpack.c.b16 %v930, %v929
      %v946 = vpack.c.b16 %v932, %v931
      %v947 = vpack.c.b16 %v934, %v933
      %v948 = vpack.c.b16 %v936, %v935
      %v949 = vpack.c.b16 %v938, %v937
      %v950 = vpack.c.b16 %v940, %v939
      %v951 = vpack.c.b16 %v942, %v941
      %v952 = vpack.c.b16 %v944, %v943
      %961 = vmatprep.subr.bf16.mxu0 0
      %962 = vmatpush1.bf16.msra.mxu0 %v945
      %963 = vmatprep.subr.bf16.mxu0 0
      %964 = vmatpush1.bf16.msra.mxu0 %v946
      %965 = vmatprep.subr.bf16.mxu0 0
      %966 = vmatpush1.bf16.msra.mxu0 %v947
      %967 = vmatprep.subr.bf16.mxu0 0
      %968 = vmatpush1.bf16.msra.mxu0 %v948
      %969 = vmatprep.subr.bf16.mxu0 0
      %970 = vmatpush1.bf16.msra.mxu0 %v949
      %971 = vmatprep.subr.bf16.mxu0 0
      %972 = vmatpush1.bf16.msra.mxu0 %v950
      %973 = vmatprep.subr.bf16.mxu0 0
      %974 = vmatpush1.bf16.msra.mxu0 %v951
      %975 = vmatprep.subr.bf16.mxu0 0
      %976 = vmatpush1.bf16.msra.mxu0 %v952
      %977 = vmatprep.subr.bf16.mxu0 0
      %978 = vmatpush1.bf16.msra.mxu0 0
      %979 = vmatprep.subr.bf16.mxu0 0
      %980 = vmatpush1.bf16.msra.mxu0 0
      %981 = vmatprep.subr.bf16.mxu0 0
      %982 = vmatpush1.bf16.msra.mxu0 0
      %983 = vmatprep.subr.bf16.mxu0 0
      %984 = vmatpush1.bf16.msra.mxu0 0
      %985 = vmatprep.subr.bf16.mxu0 0
      %986 = vmatpush1.bf16.msra.mxu0 0
      %987 = vmatprep.subr.bf16.mxu0 0
      %988 = vmatpush1.bf16.msra.mxu0 0
      %989 = vmatprep.subr.bf16.mxu0 0
      %990 = vmatpush1.bf16.msra.mxu0 0
      %991 = vmatprep.subr.bf16.mxu0 0
      %992 = vmatpush1.bf16.msra.mxu0 0
      %993 = vmatprep.mubr.bf16.mxu0 0
      %994 = vmatmul.mubr.bf16.gmra.mrb[0].mxu0 %v895
      %v995 = vpop.f32.mrb[0].mxu0
      %v996 = vadd.f32 0.0, %v995
      %v997 = vpop.f32.mrb[0].mxu0
      %v998 = vpop.f32.mrb[0].mxu0
      %v999 = vadd.f32 0.0, %v998
      %v1000 = vpop.f32.mrb[0].mxu0
      %1001 = vdwg.mxu0
      %v1018 = vunpack.c.l.b16 %v874
      %v1019 = vunpack.c.l.b16 %v875
      %v1020 = vunpack.c.l.b16 %v876
      %v1021 = vunpack.c.l.b16 %v877
      %v1022 = vunpack.c.l.b16 %v878
      %v1023 = vunpack.c.l.b16 %v879
      %v1024 = vunpack.c.l.b16 %v880
      %v1025 = vunpack.c.l.b16 %v881
      %v1026 = vunpack.c.l.b16 %v882
      %v1027 = vunpack.c.l.b16 %v883
      %v1028 = vunpack.c.l.b16 %v884
      %v1029 = vunpack.c.l.b16 %v885
      %v1030 = vunpack.c.l.b16 %v886
      %v1031 = vunpack.c.l.b16 %v887
      %v1032 = vunpack.c.l.b16 %v888
      %v1033 = vunpack.c.l.b16 %v889
      %v1034 = vpack.c.b16 %v1019, %v1018
      %v1035 = vpack.c.b16 %v1021, %v1020
      %v1036 = vpack.c.b16 %v1023, %v1022
      %v1037 = vpack.c.b16 %v1025, %v1024
      %v1038 = vpack.c.b16 %v1027, %v1026
      %v1039 = vpack.c.b16 %v1029, %v1028
      %v1040 = vpack.c.b16 %v1031, %v1030
      %v1041 = vpack.c.b16 %v1033, %v1032
      %1050 = vmatprep.subr.bf16.mxu0 0
      %1051 = vmatpush1.bf16.msra.mxu0 %v1034
      %1052 = vmatprep.subr.bf16.mxu0 0
      %1053 = vmatpush1.bf16.msra.mxu0 %v1035
      %1054 = vmatprep.subr.bf16.mxu0 0
      %1055 = vmatpush1.bf16.msra.mxu0 %v1036
      %1056 = vmatprep.subr.bf16.mxu0 0
      %1057 = vmatpush1.bf16.msra.mxu0 %v1037
      %1058 = vmatprep.subr.bf16.mxu0 0
      %1059 = vmatpush1.bf16.msra.mxu0 %v1038
      %1060 = vmatprep.subr.bf16.mxu0 0
      %1061 = vmatpush1.bf16.msra.mxu0 %v1039
      %1062 = vmatprep.subr.bf16.mxu0 0
      %1063 = vmatpush1.bf16.msra.mxu0 %v1040
      %1064 = vmatprep.subr.bf16.mxu0 0
      %1065 = vmatpush1.bf16.msra.mxu0 %v1041
      %1066 = vmatprep.subr.bf16.mxu0 0
      %1067 = vmatpush1.bf16.msra.mxu0 0
      %1068 = vmatprep.subr.bf16.mxu0 0
      %1069 = vmatpush1.bf16.msra.mxu0 0
      %1070 = vmatprep.subr.bf16.mxu0 0
      %1071 = vmatpush1.bf16.msra.mxu0 0
      %1072 = vmatprep.subr.bf16.mxu0 0
      %1073 = vmatpush1.bf16.msra.mxu0 0
      %1074 = vmatprep.subr.bf16.mxu0 0
      %1075 = vmatpush1.bf16.msra.mxu0 0
      %1076 = vmatprep.subr.bf16.mxu0 0
      %1077 = vmatpush1.bf16.msra.mxu0 0
      %1078 = vmatprep.subr.bf16.mxu0 0
      %1079 = vmatpush1.bf16.msra.mxu0 0
      %1080 = vmatprep.subr.bf16.mxu0 0
      %1081 = vmatpush1.bf16.msra.mxu0 0
      %1082 = vmatprep.mubr.bf16.mxu0 0
      %1083 = vmatmul.mubr.bf16.gmra.mrb[0].mxu0 %v873
      %v1084 = vpop.f32.mrb[0].mxu0
      %v1085 = vadd.f32 %v996, %v1084
      %v1086 = vpop.f32.mrb[0].mxu0
      %v1087 = vpop.f32.mrb[0].mxu0
      %v1088 = vadd.f32 %v999, %v1087
      %v1089 = vpop.f32.mrb[0].mxu0
      %1090 = vdwg.mxu0
      %s1091 = sadd.s32 %s868, 2
      %s1092 = smul.u32 %s1091, 16
      %s1093 = scalar_lea.vmem [#allocation3], %s1092
      %v1094 = vld [vmem:[%s1093] sm:$0xff]
      %v1095 = vld [vmem:[%s1093 + $0x8] sm:$0xff]
      %v1096 = vpack.c.bf16 %v1095, %v1094
      %s1097 = scalar_lea.vmem [#allocation6], 128
      %v1098 = vld [vmem:[%s1097] sm:$0xf]
      %v1099 = vld [vmem:[%s1097 + $0x4] sm:$0xf]
      %v1100 = vld [vmem:[%s1097 + $0x8] sm:$0xf]
      %v1101 = vld [vmem:[%s1097 + $0xc] sm:$0xf]
      %v1102 = vld [vmem:[%s1097 + $0x10] sm:$0xf]
      %v1103 = vld [vmem:[%s1097 + $0x14] sm:$0xf]
      %v1104 = vld [vmem:[%s1097 + $0x18] sm:$0xf]
      %v1105 = vld [vmem:[%s1097 + $0x1c] sm:$0xf]
      %v1106 = vld [vmem:[%s1097 + $0x20] sm:$0xf]
      %v1107 = vld [vmem:[%s1097 + $0x24] sm:$0xf]
      %v1108 = vld [vmem:[%s1097 + $0x28] sm:$0xf]
      %v1109 = vld [vmem:[%s1097 + $0x2c] sm:$0xf]
      %v1110 = vld [vmem:[%s1097 + $0x30] sm:$0xf]
      %v1111 = vld [vmem:[%s1097 + $0x34] sm:$0xf]
      %v1112 = vld [vmem:[%s1097 + $0x38] sm:$0xf]
      %v1113 = vld [vmem:[%s1097 + $0x3c] sm:$0xf]
      %v1130 = vunpack.c.l.b16 %v1098
      %v1131 = vunpack.c.l.b16 %v1099
      %v1132 = vunpack.c.l.b16 %v1100
      %v1133 = vunpack.c.l.b16 %v1101
      %v1134 = vunpack.c.l.b16 %v1102
      %v1135 = vunpack.c.l.b16 %v1103
      %v1136 = vunpack.c.l.b16 %v1104
      %v1137 = vunpack.c.l.b16 %v1105
      %v1138 = vunpack.c.l.b16 %v1106
      %v1139 = vunpack.c.l.b16 %v1107
      %v1140 = vunpack.c.l.b16 %v1108
      %v1141 = vunpack.c.l.b16 %v1109
      %v1142 = vunpack.c.l.b16 %v1110
      %v1143 = vunpack.c.l.b16 %v1111
      %v1144 = vunpack.c.l.b16 %v1112
      %v1145 = vunpack.c.l.b16 %v1113
      %v1146 = vpack.c.b16 %v1131, %v1130
      %v1147 = vpack.c.b16 %v1133, %v1132
      %v1148 = vpack.c.b16 %v1135, %v1134
      %v1149 = vpack.c.b16 %v1137, %v1136
      %v1150 = vpack.c.b16 %v1139, %v1138
      %v1151 = vpack.c.b16 %v1141, %v1140
      %v1152 = vpack.c.b16 %v1143, %v1142
      %v1153 = vpack.c.b16 %v1145, %v1144
      %1162 = vmatprep.subr.bf16.mxu0 0
      %1163 = vmatpush1.bf16.msra.mxu0 %v1146
      %1164 = vmatprep.subr.bf16.mxu0 0
      %1165 = vmatpush1.bf16.msra.mxu0 %v1147
      %1166 = vmatprep.subr.bf16.mxu0 0
      %1167 = vmatpush1.bf16.msra.mxu0 %v1148
      %1168 = vmatprep.subr.bf16.mxu0 0
      %1169 = vmatpush1.bf16.msra.mxu0 %v1149
      %1170 = vmatprep.subr.bf16.mxu0 0
      %1171 = vmatpush1.bf16.msra.mxu0 %v1150
      %1172 = vmatprep.subr.bf16.mxu0 0
      %1173 = vmatpush1.bf16.msra.mxu0 %v1151
      %1174 = vmatprep.subr.bf16.mxu0 0
      %1175 = vmatpush1.bf16.msra.mxu0 %v1152
      %1176 = vmatprep.subr.bf16.mxu0 0
      %1177 = vmatpush1.bf16.msra.mxu0 %v1153
      %1178 = vmatprep.subr.bf16.mxu0 0
      %1179 = vmatpush1.bf16.msra.mxu0 0
      %1180 = vmatprep.subr.bf16.mxu0 0
      %1181 = vmatpush1.bf16.msra.mxu0 0
      %1182 = vmatprep.subr.bf16.mxu0 0
      %1183 = vmatpush1.bf16.msra.mxu0 0
      %1184 = vmatprep.subr.bf16.mxu0 0
      %1185 = vmatpush1.bf16.msra.mxu0 0
      %1186 = vmatprep.subr.bf16.mxu0 0
      %1187 = vmatpush1.bf16.msra.mxu0 0
      %1188 = vmatprep.subr.bf16.mxu0 0
      %1189 = vmatpush1.bf16.msra.mxu0 0
      %1190 = vmatprep.subr.bf16.mxu0 0
      %1191 = vmatpush1.bf16.msra.mxu0 0
      %1192 = vmatprep.subr.bf16.mxu0 0
      %1193 = vmatpush1.bf16.msra.mxu0 0
      %1194 = vmatprep.mubr.bf16.mxu0 0
      %1195 = vmatmul.mubr.bf16.gmra.mrb[0].mxu0 %v1096
      %v1196 = vpop.f32.mrb[0].mxu0
      %v1197 = vadd.f32 0.0, %v1196
      %v1198 = vpop.f32.mrb[0].mxu0
      %v1199 = vpop.f32.mrb[0].mxu0
      %v1200 = vadd.f32 0.0, %v1199
      %v1201 = vpop.f32.mrb[0].mxu0
      %1202 = vdwg.mxu0
      %v1203 = vadd.f32 %v1085, %v1197
      %v1204 = vadd.f32 %v1088, %v1200
      %v1205 = vld [vmem:[%s6] sm:$0x1]
      %v1206 = vlaneseq
      %v1207 = vshrl.u32 %v1206, 7
      %v1208 = vsub.s32 0, %v1207
      %v1209 = vrot.slane %v1205, %v1208
      %v1210 = vadd.f32 %v1203, %v1209
      %v1211 = vadd.f32 %v1204, %v1209
      %v1212 = vmul.f32 %v1210, 0.2
      %v1213 = vmul.f32 %v1211, 0.2
      %v1214 = vmax.f32 %v1210, %v1212
      %v1215 = vmax.f32 %v1211, %v1213
      %v1216 = vld [vmem:[%s6 + $0x1] sm:$0x1]
      %v1217 = vlaneseq
      %v1218 = vshrl.u32 %v1217, 7
      %v1219 = vsub.s32 0, %v1218
      %v1220 = vrot.slane %v1216, %v1219
      %v1221 = vmul.f32 %v1214, %v1220
      %v1222 = vmul.f32 %v1215, %v1220
      %v1223 = vld [vmem:[%s6 + $0x2] sm:$0x1]
      %v1224 = vlaneseq
      %v1225 = vshrl.u32 %v1224, 7
      %v1226 = vsub.s32 0, %v1225
      %v1227 = vrot.slane %v1223, %v1226
      %v1228 = vadd.f32 %v1221, %v1227
      %v1229 = vadd.f32 %v1222, %v1227
      %s1230 = sadd.s32 %s863, 1
      %s1231 = smul.u32 %s1230, 16
      %s1232 = scalar_lea.vmem [#allocation4], %s1231
      %1233 = vst [vmem:[%s1232] sm:$0xff] %v1228
      %1234 = vst [vmem:[%s1232 + $0x8] sm:$0xff] %v1229
    $region80: #{forward.1} parent=1 // loop_footer
      %s867 = sadd.s32 1, %s863
    $region81: #{forward.1} parent=1 // loop_footer_branch
      %862 = sbr.rel target = $region77
    $region82: #{forward.1} parent=1 // loop_exit
      _
    loop: start=0, step=1, limit=2
    $region83: #{forward.1} parent=1 // loop_pre_header
      _
    $region84: #{forward.1} parent=1 // loop_header
      %s1236 = sphi 0, %s1240
      %p1237 = scmp.ge.s32.totalorder %s1236, 2
    $region85: #{forward.1} parent=1 // loop_header_branch
      %1239 = sbr.rel (%p1237) target = $region89
    $region86: #{forward.1} parent=1 // loop_body
      %s1241 = smul.u32 %s1236, 2
      %s1242 = smul.u32 %s1241, 16
      %s1243 = scalar_lea.vmem [#allocation4], %s1242
      %v1244 = vld [vmem:[%s1243] sm:$0xff]
      %v1245 = vld [vmem:[%s1243 + $0x8] sm:$0xff]
      %v1246 = vpack.c.bf16 %v1245, %v1244
      %v1247 = vld [vmem:[#allocation8] sm:$0xf]
      %v1248 = vld [vmem:[#allocation8 + $0x4] sm:$0xf]
      %v1249 = vld [vmem:[#allocation8 + $0x8] sm:$0xf]
      %v1250 = vld [vmem:[#allocation8 + $0xc] sm:$0xf]
      %v1251 = vld [vmem:[#allocation8 + $0x10] sm:$0xf]
      %v1252 = vld [vmem:[#allocation8 + $0x14] sm:$0xf]
      %v1253 = vld [vmem:[#allocation8 + $0x18] sm:$0xf]
      %v1254 = vld [vmem:[#allocation8 + $0x1c] sm:$0xf]
      %v1255 = vld [vmem:[#allocation8 + $0x20] sm:$0xf]
      %v1256 = vld [vmem:[#allocation8 + $0x24] sm:$0xf]
      %v1257 = vld [vmem:[#allocation8 + $0x28] sm:$0xf]
      %v1258 = vld [vmem:[#allocation8 + $0x2c] sm:$0xf]
      %v1259 = vld [vmem:[#allocation8 + $0x30] sm:$0xf]
      %v1260 = vld [vmem:[#allocation8 + $0x34] sm:$0xf]
      %v1261 = vld [vmem:[#allocation8 + $0x38] sm:$0xf]
      %v1262 = vld [vmem:[#allocation8 + $0x3c] sm:$0xf]
      %s1263 = sadd.s32 %s1241, 1
      %s1264 = smul.u32 %s1263, 16
      %s1265 = scalar_lea.vmem [#allocation4], %s1264
      %v1266 = vld [vmem:[%s1265] sm:$0xff]
      %v1267 = vld [vmem:[%s1265 + $0x8] sm:$0xff]
      %v1268 = vpack.c.bf16 %v1267, %v1266
      %s1269 = scalar_lea.vmem [#allocation8], 64
      %v1270 = vld [vmem:[%s1269] sm:$0xf]
      %v1271 = vld [vmem:[%s1269 + $0x4] sm:$0xf]
      %v1272 = vld [vmem:[%s1269 + $0x8] sm:$0xf]
      %v1273 = vld [vmem:[%s1269 + $0xc] sm:$0xf]
      %v1274 = vld [vmem:[%s1269 + $0x10] sm:$0xf]
      %v1275 = vld [vmem:[%s1269 + $0x14] sm:$0xf]
      %v1276 = vld [vmem:[%s1269 + $0x18] sm:$0xf]
      %v1277 = vld [vmem:[%s1269 + $0x1c] sm:$0xf]
      %v1278 = vld [vmem:[%s1269 + $0x20] sm:$0xf]
      %v1279 = vld [vmem:[%s1269 + $0x24] sm:$0xf]
      %v1280 = vld [vmem:[%s1269 + $0x28] sm:$0xf]
      %v1281 = vld [vmem:[%s1269 + $0x2c] sm:$0xf]
      %v1282 = vld [vmem:[%s1269 + $0x30] sm:$0xf]
      %v1283 = vld [vmem:[%s1269 + $0x34] sm:$0xf]
      %v1284 = vld [vmem:[%s1269 + $0x38] sm:$0xf]
      %v1285 = vld [vmem:[%s1269 + $0x3c] sm:$0xf]
      %v1302 = vunpack.c.l.b16 %v1270
      %v1303 = vunpack.c.l.b16 %v1271
      %v1304 = vunpack.c.l.b16 %v1272
      %v1305 = vunpack.c.l.b16 %v1273
      %v1306 = vunpack.c.l.b16 %v1274
      %v1307 = vunpack.c.l.b16 %v1275
      %v1308 = vunpack.c.l.b16 %v1276
      %v1309 = vunpack.c.l.b16 %v1277
      %v1310 = vunpack.c.l.b16 %v1278
      %v1311 = vunpack.c.l.b16 %v1279
      %v1312 = vunpack.c.l.b16 %v1280
      %v1313 = vunpack.c.l.b16 %v1281
      %v1314 = vunpack.c.l.b16 %v1282
      %v1315 = vunpack.c.l.b16 %v1283
      %v1316 = vunpack.c.l.b16 %v1284
      %v1317 = vunpack.c.l.b16 %v1285
      %v1318 = vpack.c.b16 %v1303, %v1302
      %v1319 = vpack.c.b16 %v1305, %v1304
      %v1320 = vpack.c.b16 %v1307, %v1306
      %v1321 = vpack.c.b16 %v1309, %v1308
      %v1322 = vpack.c.b16 %v1311, %v1310
      %v1323 = vpack.c.b16 %v1313, %v1312
      %v1324 = vpack.c.b16 %v1315, %v1314
      %v1325 = vpack.c.b16 %v1317, %v1316
      %1334 = vmatprep.subr.bf16.mxu0 0
      %1335 = vmatpush1.bf16.msra.mxu0 %v1318
      %1336 = vmatprep.subr.bf16.mxu0 0
      %1337 = vmatpush1.bf16.msra.mxu0 %v1319
      %1338 = vmatprep.subr.bf16.mxu0 0
      %1339 = vmatpush1.bf16.msra.mxu0 %v1320
      %1340 = vmatprep.subr.bf16.mxu0 0
      %1341 = vmatpush1.bf16.msra.mxu0 %v1321
      %1342 = vmatprep.subr.bf16.mxu0 0
      %1343 = vmatpush1.bf16.msra.mxu0 %v1322
      %1344 = vmatprep.subr.bf16.mxu0 0
      %1345 = vmatpush1.bf16.msra.mxu0 %v1323
      %1346 = vmatprep.subr.bf16.mxu0 0
      %1347 = vmatpush1.bf16.msra.mxu0 %v1324
      %1348 = vmatprep.subr.bf16.mxu0 0
      %1349 = vmatpush1.bf16.msra.mxu0 %v1325
      %1350 = vmatprep.subr.bf16.mxu0 0
      %1351 = vmatpush1.bf16.msra.mxu0 0
      %1352 = vmatprep.subr.bf16.mxu0 0
      %1353 = vmatpush1.bf16.msra.mxu0 0
      %1354 = vmatprep.subr.bf16.mxu0 0
      %1355 = vmatpush1.bf16.msra.mxu0 0
      %1356 = vmatprep.subr.bf16.mxu0 0
      %1357 = vmatpush1.bf16.msra.mxu0 0
      %1358 = vmatprep.subr.bf16.mxu0 0
      %1359 = vmatpush1.bf16.msra.mxu0 0
      %1360 = vmatprep.subr.bf16.mxu0 0
      %1361 = vmatpush1.bf16.msra.mxu0 0
      %1362 = vmatprep.subr.bf16.mxu0 0
      %1363 = vmatpush1.bf16.msra.mxu0 0
      %1364 = vmatprep.subr.bf16.mxu0 0
      %1365 = vmatpush1.bf16.msra.mxu0 0
      %1366 = vmatprep.mubr.bf16.mxu0 0
      %1367 = vmatmul.mubr.bf16.gmra.mrb[0].mxu0 %v1268
      %v1368 = vpop.f32.mrb[0].mxu0
      %v1369 = vadd.f32 0.0, %v1368
      %v1370 = vpop.f32.mrb[0].mxu0
      %v1371 = vpop.f32.mrb[0].mxu0
      %v1372 = vadd.f32 0.0, %v1371
      %v1373 = vpop.f32.mrb[0].mxu0
      %1374 = vdwg.mxu0
      %v1391 = vunpack.c.l.b16 %v1247
      %v1392 = vunpack.c.l.b16 %v1248
      %v1393 = vunpack.c.l.b16 %v1249
      %v1394 = vunpack.c.l.b16 %v1250
      %v1395 = vunpack.c.l.b16 %v1251
      %v1396 = vunpack.c.l.b16 %v1252
      %v1397 = vunpack.c.l.b16 %v1253
      %v1398 = vunpack.c.l.b16 %v1254
      %v1399 = vunpack.c.l.b16 %v1255
      %v1400 = vunpack.c.l.b16 %v1256
      %v1401 = vunpack.c.l.b16 %v1257
      %v1402 = vunpack.c.l.b16 %v1258
      %v1403 = vunpack.c.l.b16 %v1259
      %v1404 = vunpack.c.l.b16 %v1260
      %v1405 = vunpack.c.l.b16 %v1261
      %v1406 = vunpack.c.l.b16 %v1262
      %v1407 = vpack.c.b16 %v1392, %v1391
      %v1408 = vpack.c.b16 %v1394, %v1393
      %v1409 = vpack.c.b16 %v1396, %v1395
      %v1410 = vpack.c.b16 %v1398, %v1397
      %v1411 = vpack.c.b16 %v1400, %v1399
      %v1412 = vpack.c.b16 %v1402, %v1401
      %v1413 = vpack.c.b16 %v1404, %v1403
      %v1414 = vpack.c.b16 %v1406, %v1405
      %1423 = vmatprep.subr.bf16.mxu0 0
      %1424 = vmatpush1.bf16.msra.mxu0 %v1407
      %1425 = vmatprep.subr.bf16.mxu0 0
      %1426 = vmatpush1.bf16.msra.mxu0 %v1408
      %1427 = vmatprep.subr.bf16.mxu0 0
      %1428 = vmatpush1.bf16.msra.mxu0 %v1409
      %1429 = vmatprep.subr.bf16.mxu0 0
      %1430 = vmatpush1.bf16.msra.mxu0 %v1410
      %1431 = vmatprep.subr.bf16.mxu0 0
      %1432 = vmatpush1.bf16.msra.mxu0 %v1411
      %1433 = vmatprep.subr.bf16.mxu0 0
      %1434 = vmatpush1.bf16.msra.mxu0 %v1412
      %1435 = vmatprep.subr.bf16.mxu0 0
      %1436 = vmatpush1.bf16.msra.mxu0 %v1413
      %1437 = vmatprep.subr.bf16.mxu0 0
      %1438 = vmatpush1.bf16.msra.mxu0 %v1414
      %1439 = vmatprep.subr.bf16.mxu0 0
      %1440 = vmatpush1.bf16.msra.mxu0 0
      %1441 = vmatprep.subr.bf16.mxu0 0
      %1442 = vmatpush1.bf16.msra.mxu0 0
      %1443 = vmatprep.subr.bf16.mxu0 0
      %1444 = vmatpush1.bf16.msra.mxu0 0
      %1445 = vmatprep.subr.bf16.mxu0 0
      %1446 = vmatpush1.bf16.msra.mxu0 0
      %1447 = vmatprep.subr.bf16.mxu0 0
      %1448 = vmatpush1.bf16.msra.mxu0 0
      %1449 = vmatprep.subr.bf16.mxu0 0
      %1450 = vmatpush1.bf16.msra.mxu0 0
      %1451 = vmatprep.subr.bf16.mxu0 0
      %1452 = vmatpush1.bf16.msra.mxu0 0
      %1453 = vmatprep.subr.bf16.mxu0 0
      %1454 = vmatpush1.bf16.msra.mxu0 0
      %1455 = vmatprep.mubr.bf16.mxu0 0
      %1456 = vmatmul.mubr.bf16.gmra.mrb[0].mxu0 %v1246
      %v1457 = vpop.f32.mrb[0].mxu0
      %v1458 = vadd.f32 %v1369, %v1457
      %v1459 = vpop.f32.mrb[0].mxu0
      %v1460 = vpop.f32.mrb[0].mxu0
      %v1461 = vadd.f32 %v1372, %v1460
      %v1462 = vpop.f32.mrb[0].mxu0
      %1463 = vdwg.mxu0
      %s1464 = sadd.s32 %s1241, 2
      %s1465 = smul.u32 %s1464, 16
      %s1466 = scalar_lea.vmem [#allocation4], %s1465
      %v1467 = vld [vmem:[%s1466] sm:$0xff]
      %v1468 = vld [vmem:[%s1466 + $0x8] sm:$0xff]
      %v1469 = vpack.c.bf16 %v1468, %v1467
      %s1470 = scalar_lea.vmem [#allocation8], 128
      %v1471 = vld [vmem:[%s1470] sm:$0xf]
      %v1472 = vld [vmem:[%s1470 + $0x4] sm:$0xf]
      %v1473 = vld [vmem:[%s1470 + $0x8] sm:$0xf]
      %v1474 = vld [vmem:[%s1470 + $0xc] sm:$0xf]
      %v1475 = vld [vmem:[%s1470 + $0x10] sm:$0xf]
      %v1476 = vld [vmem:[%s1470 + $0x14] sm:$0xf]
      %v1477 = vld [vmem:[%s1470 + $0x18] sm:$0xf]
      %v1478 = vld [vmem:[%s1470 + $0x1c] sm:$0xf]
      %v1479 = vld [vmem:[%s1470 + $0x20] sm:$0xf]
      %v1480 = vld [vmem:[%s1470 + $0x24] sm:$0xf]
      %v1481 = vld [vmem:[%s1470 + $0x28] sm:$0xf]
      %v1482 = vld [vmem:[%s1470 + $0x2c] sm:$0xf]
      %v1483 = vld [vmem:[%s1470 + $0x30] sm:$0xf]
      %v1484 = vld [vmem:[%s1470 + $0x34] sm:$0xf]
      %v1485 = vld [vmem:[%s1470 + $0x38] sm:$0xf]
      %v1486 = vld [vmem:[%s1470 + $0x3c] sm:$0xf]
      %v1503 = vunpack.c.l.b16 %v1471
      %v1504 = vunpack.c.l.b16 %v1472
      %v1505 = vunpack.c.l.b16 %v1473
      %v1506 = vunpack.c.l.b16 %v1474
      %v1507 = vunpack.c.l.b16 %v1475
      %v1508 = vunpack.c.l.b16 %v1476
      %v1509 = vunpack.c.l.b16 %v1477
      %v1510 = vunpack.c.l.b16 %v1478
      %v1511 = vunpack.c.l.b16 %v1479
      %v1512 = vunpack.c.l.b16 %v1480
      %v1513 = vunpack.c.l.b16 %v1481
      %v1514 = vunpack.c.l.b16 %v1482
      %v1515 = vunpack.c.l.b16 %v1483
      %v1516 = vunpack.c.l.b16 %v1484
      %v1517 = vunpack.c.l.b16 %v1485
      %v1518 = vunpack.c.l.b16 %v1486
      %v1519 = vpack.c.b16 %v1504, %v1503
      %v1520 = vpack.c.b16 %v1506, %v1505
      %v1521 = vpack.c.b16 %v1508, %v1507
      %v1522 = vpack.c.b16 %v1510, %v1509
      %v1523 = vpack.c.b16 %v1512, %v1511
      %v1524 = vpack.c.b16 %v1514, %v1513
      %v1525 = vpack.c.b16 %v1516, %v1515
      %v1526 = vpack.c.b16 %v1518, %v1517
      %1535 = vmatprep.subr.bf16.mxu0 0
      %1536 = vmatpush1.bf16.msra.mxu0 %v1519
      %1537 = vmatprep.subr.bf16.mxu0 0
      %1538 = vmatpush1.bf16.msra.mxu0 %v1520
      %1539 = vmatprep.subr.bf16.mxu0 0
      %1540 = vmatpush1.bf16.msra.mxu0 %v1521
      %1541 = vmatprep.subr.bf16.mxu0 0
      %1542 = vmatpush1.bf16.msra.mxu0 %v1522
      %1543 = vmatprep.subr.bf16.mxu0 0
      %1544 = vmatpush1.bf16.msra.mxu0 %v1523
      %1545 = vmatprep.subr.bf16.mxu0 0
      %1546 = vmatpush1.bf16.msra.mxu0 %v1524
      %1547 = vmatprep.subr.bf16.mxu0 0
      %1548 = vmatpush1.bf16.msra.mxu0 %v1525
      %1549 = vmatprep.subr.bf16.mxu0 0
      %1550 = vmatpush1.bf16.msra.mxu0 %v1526
      %1551 = vmatprep.subr.bf16.mxu0 0
      %1552 = vmatpush1.bf16.msra.mxu0 0
      %1553 = vmatprep.subr.bf16.mxu0 0
      %1554 = vmatpush1.bf16.msra.mxu0 0
      %1555 = vmatprep.subr.bf16.mxu0 0
      %1556 = vmatpush1.bf16.msra.mxu0 0
      %1557 = vmatprep.subr.bf16.mxu0 0
      %1558 = vmatpush1.bf16.msra.mxu0 0
      %1559 = vmatprep.subr.bf16.mxu0 0
      %1560 = vmatpush1.bf16.msra.mxu0 0
      %1561 = vmatprep.subr.bf16.mxu0 0
      %1562 = vmatpush1.bf16.msra.mxu0 0
      %1563 = vmatprep.subr.bf16.mxu0 0
      %1564 = vmatpush1.bf16.msra.mxu0 0
      %1565 = vmatprep.subr.bf16.mxu0 0
      %1566 = vmatpush1.bf16.msra.mxu0 0
      %1567 = vmatprep.mubr.bf16.mxu0 0
      %1568 = vmatmul.mubr.bf16.gmra.mrb[0].mxu0 %v1469
      %v1569 = vpop.f32.mrb[0].mxu0
      %v1570 = vadd.f32 0.0, %v1569
      %v1571 = vpop.f32.mrb[0].mxu0
      %v1572 = vpop.f32.mrb[0].mxu0
      %v1573 = vadd.f32 0.0, %v1572
      %v1574 = vpop.f32.mrb[0].mxu0
      %1575 = vdwg.mxu0
      %v1576 = vadd.f32 %v1458, %v1570
      %v1577 = vadd.f32 %v1461, %v1573
      %v1578 = vld [vmem:[%s8] sm:$0x1]
      %v1579 = vlaneseq
      %v1580 = vshrl.u32 %v1579, 7
      %v1581 = vsub.s32 0, %v1580
      %v1582 = vrot.slane %v1578, %v1581
      %v1583 = vadd.f32 %v1576, %v1582
      %v1584 = vadd.f32 %v1577, %v1582
      %v1585 = vmul.f32 %v1583, 0.2
      %v1586 = vmul.f32 %v1584, 0.2
      %v1587 = vmax.f32 %v1583, %v1585
      %v1588 = vmax.f32 %v1584, %v1586
      %v1589 = vld [vmem:[%s8 + $0x1] sm:$0x1]
      %v1590 = vlaneseq
      %v1591 = vshrl.u32 %v1590, 7
      %v1592 = vsub.s32 0, %v1591
      %v1593 = vrot.slane %v1589, %v1592
      %v1594 = vmul.f32 %v1587, %v1593
      %v1595 = vmul.f32 %v1588, %v1593
      %v1596 = vld [vmem:[%s8 + $0x2] sm:$0x1]
      %v1597 = vlaneseq
      %v1598 = vshrl.u32 %v1597, 7
      %v1599 = vsub.s32 0, %v1598
      %v1600 = vrot.slane %v1596, %v1599
      %v1601 = vadd.f32 %v1594, %v1600
      %v1602 = vadd.f32 %v1595, %v1600
      %s1603 = sadd.s32 %s1236, 1
      %s1604 = smul.u32 %s1603, 16
      %s1605 = scalar_lea.vmem [#allocation5], %s1604
      %1606 = vst [vmem:[%s1605] sm:$0xff] %v1601
      %1607 = vst [vmem:[%s1605 + $0x8] sm:$0xff] %v1602
    $region87: #{forward.1} parent=1 // loop_footer
      %s1240 = sadd.s32 1, %s1236
    $region88: #{forward.1} parent=1 // loop_footer_branch
      %1235 = sbr.rel target = $region84
    $region89: #{forward.1} parent=1 // loop_exit
      _
    %s1608 = scalar_lea.vmem [#allocation5], 16
    %v1609 = vld [vmem:[%s1608] sm:$0xff]
    %v1610 = vld [vmem:[%s1608 + $0x8] sm:$0xff]
    %s1611 = scalar_lea.vmem [#allocation5], 32
    %v1612 = vld [vmem:[%s1611] sm:$0xff]
    %v1613 = vld [vmem:[%s1611 + $0x8] sm:$0xff]
    %v1614 = vpack.c.bf16 %v1610, %v1609
    %v1615 = vpack.c.bf16 %v1613, %v1612
    %v1616 = vld [vmem:[#allocation10] sm:$0xf]
    %v1617 = vld [vmem:[#allocation10 + $0x4] sm:$0xf]
    %v1618 = vld [vmem:[#allocation10 + $0x8] sm:$0xf]
    %v1619 = vld [vmem:[#allocation10 + $0xc] sm:$0xf]
    %v1620 = vld [vmem:[#allocation10 + $0x10] sm:$0xf]
    %v1621 = vld [vmem:[#allocation10 + $0x14] sm:$0xf]
    %v1622 = vld [vmem:[#allocation10 + $0x18] sm:$0xf]
    %v1623 = vld [vmem:[#allocation10 + $0x1c] sm:$0xf]
    %v1624 = vld [vmem:[#allocation10 + $0x20] sm:$0xf]
    %v1625 = vld [vmem:[#allocation10 + $0x24] sm:$0xf]
    %v1626 = vld [vmem:[#allocation10 + $0x28] sm:$0xf]
    %v1627 = vld [vmem:[#allocation10 + $0x2c] sm:$0xf]
    %v1628 = vld [vmem:[#allocation10 + $0x30] sm:$0xf]
    %v1629 = vld [vmem:[#allocation10 + $0x34] sm:$0xf]
    %v1630 = vld [vmem:[#allocation10 + $0x38] sm:$0xf]
    %v1631 = vld [vmem:[#allocation10 + $0x3c] sm:$0xf]
    %v1632 = vld [vmem:[#allocation10 + $0x40] sm:$0xf]
    %v1633 = vld [vmem:[#allocation10 + $0x44] sm:$0xf]
    %v1634 = vld [vmem:[#allocation10 + $0x48] sm:$0xf]
    %v1635 = vld [vmem:[#allocation10 + $0x4c] sm:$0xf]
    %v1636 = vld [vmem:[#allocation10 + $0x50] sm:$0xf]
    %v1637 = vld [vmem:[#allocation10 + $0x54] sm:$0xf]
    %v1638 = vld [vmem:[#allocation10 + $0x58] sm:$0xf]
    %v1639 = vld [vmem:[#allocation10 + $0x5c] sm:$0xf]
    %v1640 = vld [vmem:[#allocation10 + $0x60] sm:$0xf]
    %v1641 = vld [vmem:[#allocation10 + $0x64] sm:$0xf]
    %v1642 = vld [vmem:[#allocation10 + $0x68] sm:$0xf]
    %v1643 = vld [vmem:[#allocation10 + $0x6c] sm:$0xf]
    %v1644 = vld [vmem:[#allocation10 + $0x70] sm:$0xf]
    %v1645 = vld [vmem:[#allocation10 + $0x74] sm:$0xf]
    %v1646 = vld [vmem:[#allocation10 + $0x78] sm:$0xf]
    %v1647 = vld [vmem:[#allocation10 + $0x7c] sm:$0xf]
    %v1648 = vld [vmem:[#allocation11] sm:$0x1]
    %v1650 = vlaneseq
    %v1651 = vshrl.u32 %v1650, 7
    %v1652 = vsub.s32 0, %v1651
    %v1653 = vrot.slane %v1648, %v1652
    %v1687 = vunpack.c.l.b16 %v1616
    %v1688 = vunpack.c.l.b16 %v1617
    %v1689 = vunpack.c.l.b16 %v1618
    %v1690 = vunpack.c.l.b16 %v1619
    %v1691 = vunpack.c.l.b16 %v1620
    %v1692 = vunpack.c.l.b16 %v1621
    %v1693 = vunpack.c.l.b16 %v1622
    %v1694 = vunpack.c.l.b16 %v1623
    %v1695 = vunpack.c.l.b16 %v1624
    %v1696 = vunpack.c.l.b16 %v1625
    %v1697 = vunpack.c.l.b16 %v1626
    %v1698 = vunpack.c.l.b16 %v1627
    %v1699 = vunpack.c.l.b16 %v1628
    %v1700 = vunpack.c.l.b16 %v1629
    %v1701 = vunpack.c.l.b16 %v1630
    %v1702 = vunpack.c.l.b16 %v1631
    %v1703 = vunpack.c.l.b16 %v1632
    %v1704 = vunpack.c.l.b16 %v1633
    %v1705 = vunpack.c.l.b16 %v1634
    %v1706 = vunpack.c.l.b16 %v1635
    %v1707 = vunpack.c.l.b16 %v1636
    %v1708 = vunpack.c.l.b16 %v1637
    %v1709 = vunpack.c.l.b16 %v1638
    %v1710 = vunpack.c.l.b16 %v1639
    %v1711 = vunpack.c.l.b16 %v1640
    %v1712 = vunpack.c.l.b16 %v1641
    %v1713 = vunpack.c.l.b16 %v1642
    %v1714 = vunpack.c.l.b16 %v1643
    %v1715 = vunpack.c.l.b16 %v1644
    %v1716 = vunpack.c.l.b16 %v1645
    %v1717 = vunpack.c.l.b16 %v1646
    %v1718 = vunpack.c.l.b16 %v1647
    %v1719 = vpack.c.b16 %v1688, %v1687
    %v1720 = vpack.c.b16 %v1690, %v1689
    %v1721 = vpack.c.b16 %v1692, %v1691
    %v1722 = vpack.c.b16 %v1694, %v1693
    %v1723 = vpack.c.b16 %v1696, %v1695
    %v1724 = vpack.c.b16 %v1698, %v1697
    %v1725 = vpack.c.b16 %v1700, %v1699
    %v1726 = vpack.c.b16 %v1702, %v1701
    %v1727 = vpack.c.b16 %v1704, %v1703
    %v1728 = vpack.c.b16 %v1706, %v1705
    %v1729 = vpack.c.b16 %v1708, %v1707
    %v1730 = vpack.c.b16 %v1710, %v1709
    %v1731 = vpack.c.b16 %v1712, %v1711
    %v1732 = vpack.c.b16 %v1714, %v1713
    %v1733 = vpack.c.b16 %v1716, %v1715
    %v1734 = vpack.c.b16 %v1718, %v1717
    %1751 = vmatprep.subr.bf16.mxu0 0
    %1752 = vmatpush1.bf16.msra.mxu0 %v1719
    %1753 = vmatprep.subr.bf16.mxu0 0
    %1754 = vmatpush1.bf16.msra.mxu0 %v1720
    %1755 = vmatprep.subr.bf16.mxu0 0
    %1756 = vmatpush1.bf16.msra.mxu0 %v1721
    %1757 = vmatprep.subr.bf16.mxu0 0
    %1758 = vmatpush1.bf16.msra.mxu0 %v1722
    %1759 = vmatprep.subr.bf16.mxu0 0
    %1760 = vmatpush1.bf16.msra.mxu0 %v1723
    %1761 = vmatprep.subr.bf16.mxu0 0
    %1762 = vmatpush1.bf16.msra.mxu0 %v1724
    %1763 = vmatprep.subr.bf16.mxu0 0
    %1764 = vmatpush1.bf16.msra.mxu0 %v1725
    %1765 = vmatprep.subr.bf16.mxu0 0
    %1766 = vmatpush1.bf16.msra.mxu0 %v1726
    %1767 = vmatprep.subr.bf16.mxu0 0
    %1768 = vmatpush1.bf16.msra.mxu0 %v1727
    %1769 = vmatprep.subr.bf16.mxu0 0
    %1770 = vmatpush1.bf16.msra.mxu0 %v1728
    %1771 = vmatprep.subr.bf16.mxu0 0
    %1772 = vmatpush1.bf16.msra.mxu0 %v1729
    %1773 = vmatprep.subr.bf16.mxu0 0
    %1774 = vmatpush1.bf16.msra.mxu0 %v1730
    %1775 = vmatprep.subr.bf16.mxu0 0
    %1776 = vmatpush1.bf16.msra.mxu0 %v1731
    %1777 = vmatprep.subr.bf16.mxu0 0
    %1778 = vmatpush1.bf16.msra.mxu0 %v1732
    %1779 = vmatprep.subr.bf16.mxu0 0
    %1780 = vmatpush1.bf16.msra.mxu0 %v1733
    %1781 = vmatprep.subr.bf16.mxu0 0
    %1782 = vmatpush1.bf16.msra.mxu0 %v1734
    %1783 = vmatprep.mubr.bf16.mxu0 %v1615
    %1784 = vmatmul.mubr.bf16.gmra.mrb[0].mxu0 %v1614
    %v1785 = vpop.f32.mrb[0].mxu0
    %v1786 = vadd.f32 %v1653, %v1785
    %v1787 = vpop.f32.mrb[0].mxu0
    %v1788 = vpop.f32.mrb[0].mxu0
    %v1789 = vadd.f32 %v1653, %v1788
    %v1790 = vpop.f32.mrb[0].mxu0
    %1791 = vdwg.mxu0
    %1792 = vst [vmem:[%s11] sm:$0xff] %v1786
    %1793 = vst [vmem:[%s11 + $0x8] sm:$0xff] %v1789
    // Predicated region
    $region90: #{forward.1} parent=1 // pred_check
      _
    $region91: #{forward.1} parent=1 // pred_check_branch
      %1795 = sbr.rel (0) target = $region93
    $region92: #{forward.1} parent=1 // pred_region
      _
    $region93: #{forward.1} parent=1 // pred_fallthru
      _
    // Predicated region
    $region94: #{forward.1} parent=1 // pred_check
      _
    $region95: #{forward.1} parent=1 // pred_check_branch
      %1797 = sbr.rel (0) target = $region97
    $region96: #{forward.1} parent=1 // pred_region
      _
    $region97: #{forward.1} parent=1 // pred_fallthru
      _
    %1798 = vsyncpa [#allocation7], 1
    %1799 = vsyncpa [#allocation9], 1
    %1800 = vsyncpa [#allocation12], 1

</llo_original>
